<compile_context>
chip_gen: v7x
topology: tpu7x:2x2x1
jax: 0.10.0
libtpu: 0.0.40
codegen_flags: <defaults>
</compile_context>

<pallas_src>
import math

import jax
import jax.numpy as jnp
import numpy as np
from jax import lax
from jax.experimental import pallas as pl
from jax.experimental.pallas import tpu as pltpu


# ---------------------------------------------------------------------------
# helpers
# ---------------------------------------------------------------------------
def _round_up(x, m):
    return ((x + m - 1) // m) * m


def _pad_gate_cols(w, hd, hd_pad):
    """(rows, 4*hd) -> (rows, 4*hd_pad): each PyTorch gate block (i,f,g,o) is
    moved to a lane-aligned slot of width hd_pad; padded columns are zero."""
    rows = w.shape[0]
    out = jnp.zeros((rows, 4 * hd_pad), w.dtype)
    for g in range(4):
        out = out.at[:, g * hd_pad: g * hd_pad + hd].set(w[:, g * hd:(g + 1) * hd])
    return out


def _pad_rows(w, rows_pad):
    return jnp.pad(w, ((0, rows_pad - w.shape[0]), (0, 0)))


# ---------------------------------------------------------------------------
# fused kernel: per-chunk input projection + bidirectional LSTM recurrence
#   grid = (direction, time_chunk); h/c carried in VMEM scratch
# ---------------------------------------------------------------------------
def _bilstm_kernel(len_ref, x_ref, wih_ref, whh_ref, b_ref,
                   out_ref, hn_ref, cn_ref, gates_sc, h_sc, c_sc):
    d = pl.program_id(0)                 # 0 = forward, 1 = backward
    tc = pl.program_id(1)                # time-chunk index (traversal order)
    n_tc = pl.num_programs(1)
    chunk, bpad, emb_h = x_ref.shape     # (chunk, B_pad, H)
    hd = whh_ref.shape[0]                # Hd_pad

    @pl.when(tc == 0)
    def _():
        h_sc[...] = jnp.zeros_like(h_sc)
        c_sc[...] = jnp.zeros_like(c_sc)

    # Hoisted per-chunk input projection: one big MXU matmul covering every
    # timestep of the chunk (keeps x @ W_ih off the sequential path, and the
    # padded gates never round-trip through HBM).
    x2d = x_ref[...].reshape(chunk * bpad, emb_h)
    gates_in = (jnp.dot(x2d, wih_ref[...],
                        preferred_element_type=jnp.float32) + b_ref[...])
    gates_sc[...] = gates_in.reshape(chunk, bpad, 4 * hd)

    lengths = len_ref[...]               # (B_pad, 1) int32
    is_fwd = d == 0
    # global time offset of this chunk (chunks traversed in reverse for bwd)
    base_t = jnp.where(is_fwd, tc, n_tc - 1 - tc) * chunk

    def step(i, carry):
        h, c = carry
        local_t = jnp.where(is_fwd, i, chunk - 1 - i)
        gates = gates_sc[local_t] + jnp.dot(
            h, whh_ref[...], preferred_element_type=jnp.float32)
        # PyTorch gate order: i, f, g, o  (each slice is 128-lane aligned)
        i_g = jax.nn.sigmoid(gates[:, 0 * hd:1 * hd])
        f_g = jax.nn.sigmoid(gates[:, 1 * hd:2 * hd])
        g_g = jnp.tanh(gates[:, 2 * hd:3 * hd])
        o_g = jax.nn.sigmoid(gates[:, 3 * hd:4 * hd])
        c_new = f_g * c + i_g * g_g
        h_new = o_g * jnp.tanh(c_new)
        valid = (base_t + local_t) < lengths          # (B_pad, 1) bool
        h = jnp.where(valid, h_new, h)
        c = jnp.where(valid, c_new, c)
        out_ref[local_t] = jnp.where(valid, h, 0.0)   # padded rows -> 0
        return (h, c)

    h, c = lax.fori_loop(0, chunk, step, (h_sc[...], c_sc[...]))
    h_sc[...] = h
    c_sc[...] = c

    @pl.when(tc == n_tc - 1)
    def _():
        hn_ref[...] = h
        cn_ref[...] = c


# ---------------------------------------------------------------------------
# wrapper: eval-mode forward of the PyTorch Encoder
# ---------------------------------------------------------------------------
def encoder_forward(params, src, lengths):
    """src: (B, T) int32 token ids, lengths: (B,) int32 with max(lengths) == T.
    Returns (encoder_output (B,T,H), (h_n (2,B,H//2), c_n (2,B,H//2)))."""
    emb_table = params["embedding"]
    H = emb_table.shape[1]
    Hd = params["whh_f"].shape[0]
    B, T = src.shape

    # ---- padded, lane/sublane-aligned shapes --------------------------------
    Hd_pad = _round_up(Hd, 128)
    B_pad = _round_up(B, 8)
    # time-chunk size: keep in-flight buffers small (x + gates scratch + out,
    # double-buffered); works for v7x's 64 MiB VMEM as well as v5e/v6e.
    bytes_per_step = B_pad * (2 * H + 4 * Hd_pad + 2 * Hd_pad) * 4
    chunk = max(1, min(T, (6 * 1024 * 1024) // bytes_per_step, 64))
    T_pad = _round_up(T, chunk)
    num_tc = T_pad // chunk

    # ---- glue: time-major embedding gather + padding (single transpose) -----
    emb_tm = emb_table[src.T].astype(jnp.float32)                  # (T, B, H)
    emb_tm = jnp.pad(emb_tm, ((0, T_pad - T), (0, B_pad - B), (0, 0)))

    len_pad = jnp.pad(lengths.astype(jnp.int32).reshape(B, 1),
                      ((0, B_pad - B), (0, 0)))                    # (B_pad, 1)

    # ---- gate-block padded, stacked (per-direction) weights ------------------
    wih = jnp.stack([_pad_gate_cols(params["wih_f"], Hd, Hd_pad),
                     _pad_gate_cols(params["wih_b"], Hd, Hd_pad)])            # (2,H,4Hp)
    whh = jnp.stack([_pad_rows(_pad_gate_cols(params["whh_f"], Hd, Hd_pad), Hd_pad),
                     _pad_rows(_pad_gate_cols(params["whh_b"], Hd, Hd_pad), Hd_pad)])  # (2,Hp,4Hp)
    bias = jnp.stack([_pad_gate_cols(params["b_f"], Hd, Hd_pad),
                      _pad_gate_cols(params["b_b"], Hd, Hd_pad)])             # (2,1,4Hp)

    def time_idx(d, tc):                 # reversed chunk traversal for backward
        return d * (num_tc - 1 - tc) + (1 - d) * tc

    flops = (2 * 2 * T_pad * B_pad * H * 4 * Hd_pad          # input projection
             + 2 * 2 * T_pad * B_pad * Hd_pad * 4 * Hd_pad)  # recurrence
    trans = 2 * T_pad * B_pad * 5 * Hd_pad
    bytes_acc = (2 * emb_tm.size + wih.size + whh.size + bias.size
                 + 2 * T_pad * B_pad * Hd_pad + 4 * B_pad * Hd_pad
                 + len_pad.size) * 4

    out_pad, hn_pad, cn_pad = pl.pallas_call(
        _bilstm_kernel,
        out_shape=(
            jax.ShapeDtypeStruct((2, T_pad, B_pad, Hd_pad), jnp.float32),
            jax.ShapeDtypeStruct((2, B_pad, Hd_pad), jnp.float32),
            jax.ShapeDtypeStruct((2, B_pad, Hd_pad), jnp.float32),
        ),
        grid_spec=pltpu.PrefetchScalarGridSpec(
            num_scalar_prefetch=0,
            grid=(2, num_tc),
            in_specs=[
                pl.BlockSpec((B_pad, 1), lambda d, tc: (0, 0)),
                pl.BlockSpec((chunk, B_pad, H),
                             lambda d, tc: (time_idx(d, tc), 0, 0)),
                pl.BlockSpec((None, H, 4 * Hd_pad), lambda d, tc: (d, 0, 0)),
                pl.BlockSpec((None, Hd_pad, 4 * Hd_pad),
                             lambda d, tc: (d, 0, 0)),
                pl.BlockSpec((None, 1, 4 * Hd_pad), lambda d, tc: (d, 0, 0)),
            ],
            out_specs=(
                pl.BlockSpec((None, chunk, B_pad, Hd_pad),
                             lambda d, tc: (d, time_idx(d, tc), 0, 0)),
                pl.BlockSpec((None, B_pad, Hd_pad), lambda d, tc: (d, 0, 0)),
                pl.BlockSpec((None, B_pad, Hd_pad), lambda d, tc: (d, 0, 0)),
            ),
            scratch_shapes=[pltpu.VMEM((chunk, B_pad, 4 * Hd_pad), jnp.float32),
                            pltpu.VMEM((B_pad, Hd_pad), jnp.float32),
                            pltpu.VMEM((B_pad, Hd_pad), jnp.float32)],
        ),
        compiler_params=pltpu.CompilerParams(
            dimension_semantics=("parallel", "arbitrary"),
            vmem_limit_bytes=32 * 1024 * 1024),
        cost_estimate=pl.CostEstimate(flops=flops, transcendentals=trans,
                                      bytes_accessed=bytes_acc),
    )(len_pad, emb_tm, wih, whh, bias)

    # ---- glue: strip padding, fuse directions, back to batch-first ----------
    out_f = out_pad[0, :T, :B, :Hd]
    out_b = out_pad[1, :T, :B, :Hd]
    encoder_output = jnp.transpose(
        jnp.concatenate([out_f, out_b], axis=-1), (1, 0, 2))       # (B, T, H)
    h_n = hn_pad[:, :B, :Hd]
    c_n = cn_pad[:, :B, :Hd]
    # TODO(synk): nn.Dropout is training-only; this implements the eval path.
    return encoder_output, (h_n, c_n)


# ---------------------------------------------------------------------------
# deterministic synthetic parameters matching the module's shapes
# ---------------------------------------------------------------------------
def init_params(key, src_vocab_size, hidden_size, padding_idx):
    H = hidden_size
    Hd = H // 2
    ks = jax.random.split(key, 9)
    scale = 1.0 / float(Hd) ** 0.5

    def u(k, shape):
        return jax.random.uniform(k, shape, jnp.float32, -scale, scale)

    emb = jax.random.normal(ks[0], (src_vocab_size, H), jnp.float32)
    emb = emb.at[padding_idx].set(0.0)                 # padding_idx row = 0

    return {
        "embedding": emb,
        # stored transposed relative to PyTorch (so the kernels do x @ W)
        "wih_f": u(ks[1], (H, 4 * Hd)),
        "whh_f": u(ks[2], (Hd, 4 * Hd)),
        "b_f": u(ks[3], (1, 4 * Hd)) + u(ks[4], (1, 4 * Hd)),   # b_ih + b_hh
        "wih_b": u(ks[5], (H, 4 * Hd)),
        "whh_b": u(ks[6], (Hd, 4 * Hd)),
        "b_b": u(ks[7], (1, 4 * Hd)) + u(ks[8], (1, 4 * Hd)),
    }


if __name__ == "__main__":
    key = jax.random.PRNGKey(0)
    src_vocab_size, hidden_size, padding_idx = 20, 32, 0
    B, T = 2, 8
    Hd = hidden_size // 2

    params = init_params(key, src_vocab_size, hidden_size, padding_idx)

    src = jax.random.randint(jax.random.PRNGKey(1), (B, T), 1, src_vocab_size,
                             dtype=jnp.int32)
    lengths = jnp.array([T, 5], dtype=jnp.int32)       # max(lengths) == T
    # positions past each sequence length use the padding token
    src = jnp.where(jnp.arange(T)[None, :] < lengths[:, None], src, padding_idx)

    encoder_output, (h_n, c_n) = encoder_forward(params, src, lengths)
    jax.block_until_ready((encoder_output, h_n, c_n))

    assert encoder_output.shape == (B, T, hidden_size)
    assert h_n.shape == (2, B, Hd)
    assert c_n.shape == (2, B, Hd)

    enc = np.asarray(encoder_output)
    hn = np.asarray(h_n)
    assert np.isfinite(enc).all()
    # pack/pad semantics: padded timesteps of sequence 1 (len=5) are exactly 0
    assert np.all(enc[1, 5:, :] == 0.0)
    # forward final state == forward output at t = len-1
    assert np.allclose(hn[0, 0], enc[0, 7, :Hd], atol=1e-6)
    assert np.allclose(hn[0, 1], enc[1, 4, :Hd], atol=1e-6)
    # backward final state == backward output at t = 0
    assert np.allclose(hn[1, 0], enc[0, 0, Hd:], atol=1e-6)
    assert np.allclose(hn[1, 1], enc[1, 0, Hd:], atol=1e-6)

    print("KERNEL_OK")
</pallas_src>

<mosaic_0001>
module attributes {stable_mosaic.version = 11 : i64} {
  func.func @_bilstm_kernel(%arg0: i32, %arg1: i32, %arg2: memref<8x1xi32, #tpu.memory_space<vmem>>, %arg3: memref<8x8x32xf32, #tpu.memory_space<vmem>>, %arg4: memref<1x32x512xf32, #tpu.memory_space<vmem>>, %arg5: memref<1x128x512xf32, #tpu.memory_space<vmem>>, %arg6: memref<1x1x512xf32, #tpu.memory_space<vmem>>, %arg7: memref<1x8x8x128xf32, #tpu.memory_space<vmem>>, %arg8: memref<1x8x128xf32, #tpu.memory_space<vmem>>, %arg9: memref<1x8x128xf32, #tpu.memory_space<vmem>>, %arg10: memref<8x8x512xf32, #tpu.memory_space<vmem>>, %arg11: memref<8x128xf32, #tpu.memory_space<vmem>>, %arg12: memref<8x128xf32, #tpu.memory_space<vmem>>) attributes {dimension_semantics = [#tpu.dimension_semantics<parallel>, #tpu.dimension_semantics<arbitrary>], iteration_bounds = array<i64: 2, 1>, scalar_prefetch = 0 : i64, scratch_operands = 3 : i64, tpu.core_type = #tpu.core_type<tc>, window_params = [{pipeline_mode = #tpu.pipeline_mode<synchronous>, transform_indices = @transform_0, window_bounds = array<i64: 8, 1>}, {transform_indices = @transform_1, window_bounds = array<i64: 8, 8, 32>}, {transform_indices = @transform_2, window_bounds = array<i64: 1, 32, 512>}, {transform_indices = @transform_3, window_bounds = array<i64: 1, 128, 512>}, {transform_indices = @transform_4, window_bounds = array<i64: 1, 1, 512>}, {transform_indices = @transform_5, window_bounds = array<i64: 1, 8, 8, 128>}, {transform_indices = @transform_6, window_bounds = array<i64: 1, 8, 128>}, {transform_indices = @transform_7, window_bounds = array<i64: 1, 8, 128>}]} {
    %c0_i32 = arith.constant 0 : i32
    %0 = arith.cmpi eq, %arg1, %c0_i32 : i32
    %1 = arith.extui %0 : i1 to i32
    %c0_i32_0 = arith.constant 0 : i32
    %2 = arith.cmpi ne, %1, %c0_i32_0 : i32
    scf.if %2 {
      %cst_29 = arith.constant 0.000000e+00 : f32
      %28 = vector.broadcast %cst_29 : f32 to vector<8x128xf32>
      %c0_30 = arith.constant 0 : index
      %c0_31 = arith.constant 0 : index
      %29 = vector.load %arg11[%c0_30, %c0_31] : memref<8x128xf32, #tpu.memory_space<vmem>>, vector<8x128xf32>
      tpu.vector_store %arg11[%c0_30, %c0_31], %28 {strides = array<i32>} : memref<8x128xf32, #tpu.memory_space<vmem>>, vector<8x128xf32>,
      %cst_32 = arith.constant 0.000000e+00 : f32
      %30 = vector.broadcast %cst_32 : f32 to vector<8x128xf32>
      %c0_33 = arith.constant 0 : index
      %c0_34 = arith.constant 0 : index
      %31 = vector.load %arg12[%c0_33, %c0_34] : memref<8x128xf32, #tpu.memory_space<vmem>>, vector<8x128xf32>
      tpu.vector_store %arg12[%c0_33, %c0_34], %30 {strides = array<i32>} : memref<8x128xf32, #tpu.memory_space<vmem>>, vector<8x128xf32>,
    } else {
    }
    %c0 = arith.constant 0 : index
    %c0_1 = arith.constant 0 : index
    %c0_2 = arith.constant 0 : index
    %3 = vector.load %arg3[%c0, %c0_1, %c0_2] : memref<8x8x32xf32, #tpu.memory_space<vmem>>, vector<8x8x32xf32>
    %4 = vector.shape_cast %3 : vector<8x8x32xf32> to vector<64x32xf32>
    %c0_3 = arith.constant 0 : index
    %c0_4 = arith.constant 0 : index
    %c0_5 = arith.constant 0 : index
    %5 = vector.load %arg4[%c0_3, %c0_4, %c0_5] : memref<1x32x512xf32, #tpu.memory_space<vmem>>, vector<1x32x512xf32>
    %6 = vector.shape_cast %5 : vector<1x32x512xf32> to vector<32x512xf32>
    %cst = arith.constant dense<0.000000e+00> : vector<64x512xf32>
    %7 = tpu.matmul %4, %6, %cst {dimension_numbers = #tpu.dot_dimension_numbers<[1], [0], [0], [1], [0, 0, 1, 1], [], []>} : vector<64x32xf32>, vector<32x512xf32>, vector<64x512xf32> -> vector<64x512xf32>
    %c0_6 = arith.constant 0 : index
    %c0_7 = arith.constant 0 : index
    %c0_8 = arith.constant 0 : index
    %8 = vector.load %arg6[%c0_6, %c0_7, %c0_8] : memref<1x1x512xf32, #tpu.memory_space<vmem>>, vector<1x1x512xf32>
    %9 = vector.shape_cast %8 : vector<1x1x512xf32> to vector<1x512xf32>
    %10 = vector.broadcast %9 : vector<1x512xf32> to vector<64x512xf32>
    %11 = arith.addf %7, %10 : vector<64x512xf32>
    %12 = vector.shape_cast %11 : vector<64x512xf32> to vector<8x8x512xf32>
    %c0_9 = arith.constant 0 : index
    %c0_10 = arith.constant 0 : index
    %c0_11 = arith.constant 0 : index
    %13 = vector.load %arg10[%c0_9, %c0_10, %c0_11] : memref<8x8x512xf32, #tpu.memory_space<vmem>>, vector<8x8x512xf32>
    tpu.vector_store %arg10[%c0_9, %c0_10, %c0_11], %12 {strides = array<i32>} : memref<8x8x512xf32, #tpu.memory_space<vmem>>, vector<8x8x512xf32>,
    %c0_12 = arith.constant 0 : index
    %c0_13 = arith.constant 0 : index
    %14 = vector.load %arg2[%c0_12, %c0_13] : memref<8x1xi32, #tpu.memory_space<vmem>>, vector<8x1xi32>
    %c0_i32_14 = arith.constant 0 : i32
    %15 = arith.cmpi eq, %arg0, %c0_i32_14 : i32
    %c0_i32_15 = arith.constant 0 : i32
    %16 = arith.subi %c0_i32_15, %arg1 : i32
    %17 = arith.select %15, %arg1, %16 : i32
    %c8_i32 = arith.constant 8 : i32
    %18 = arith.muli %17, %c8_i32 : i32
    %c0_16 = arith.constant 0 : index
    %c0_17 = arith.constant 0 : index
    %19 = vector.load %arg11[%c0_16, %c0_17] : memref<8x128xf32, #tpu.memory_space<vmem>>, vector<8x128xf32>
    %c0_18 = arith.constant 0 : index
    %c0_19 = arith.constant 0 : index
    %20 = vector.load %arg12[%c0_18, %c0_19] : memref<8x128xf32, #tpu.memory_space<vmem>>, vector<8x128xf32>
    %c0_i32_20 = arith.constant 0 : i32
    %c8_i32_21 = arith.constant 8 : i32
    %21 = arith.addi %c0_i32_20, %c8_i32_21 : i32
    %c1_i32 = arith.constant 1 : i32
    %22:2 = scf.for %arg13 = %c0_i32_20 to %21 step %c1_i32 iter_args(%arg14 = %19, %arg15 = %20) -> (vector<8x128xf32>, vector<8x128xf32>)  : i32 {
      %c7_i32 = arith.constant 7 : i32
      %28 = arith.subi %c7_i32, %arg13 : i32
      %29 = arith.select %15, %arg13, %28 : i32
      %30 = arith.index_cast %29 : i32 to index
      %c0_29 = arith.constant 0 : index
      %c0_30 = arith.constant 0 : index
      %31 = vector.load %arg10[%30, %c0_29, %c0_30] : memref<8x8x512xf32, #tpu.memory_space<vmem>>, vector<1x8x512xf32>
      %32 = vector.shape_cast %31 : vector<1x8x512xf32> to vector<8x512xf32>
      %c0_31 = arith.constant 0 : index
      %c0_32 = arith.constant 0 : index
      %c0_33 = arith.constant 0 : index
      %33 = vector.load %arg5[%c0_31, %c0_32, %c0_33] : memref<1x128x512xf32, #tpu.memory_space<vmem>>, vector<1x128x512xf32>
      %34 = vector.shape_cast %33 : vector<1x128x512xf32> to vector<128x512xf32>
      %cst_34 = arith.constant dense<0.000000e+00> : vector<8x512xf32>
      %35 = tpu.matmul %arg14, %34, %cst_34 {dimension_numbers = #tpu.dot_dimension_numbers<[1], [0], [0], [1], [0, 0, 1, 1], [], []>} : vector<8x128xf32>, vector<128x512xf32>, vector<8x512xf32> -> vector<8x512xf32>
      %36 = arith.addf %32, %35 : vector<8x512xf32>
      %37 = vector.extract_strided_slice %36 {offsets = [0, 0], sizes = [8, 128], strides = [1, 1]} : vector<8x512xf32> to vector<8x128xf32>
      %38 = arith.negf %37 : vector<8x128xf32>
      %39 = math.exp %38 : vector<8x128xf32>
      %cst_35 = arith.constant 1.000000e+00 : f32
      %40 = vector.broadcast %cst_35 : f32 to vector<8x128xf32>
      %41 = arith.addf %40, %39 : vector<8x128xf32>
      %42 = arith.divf %40, %41 : vector<8x128xf32>
      %43 = vector.extract_strided_slice %36 {offsets = [0, 128], sizes = [8, 128], strides = [1, 1]} : vector<8x512xf32> to vector<8x128xf32>
      %44 = arith.negf %43 : vector<8x128xf32>
      %45 = math.exp %44 : vector<8x128xf32>
      %cst_36 = arith.constant 1.000000e+00 : f32
      %46 = vector.broadcast %cst_36 : f32 to vector<8x128xf32>
      %47 = arith.addf %46, %45 : vector<8x128xf32>
      %48 = arith.divf %46, %47 : vector<8x128xf32>
      %49 = vector.extract_strided_slice %36 {offsets = [0, 256], sizes = [8, 128], strides = [1, 1]} : vector<8x512xf32> to vector<8x128xf32>
      %50 = math.tanh %49 : vector<8x128xf32>
      %51 = vector.extract_strided_slice %36 {offsets = [0, 384], sizes = [8, 128], strides = [1, 1]} : vector<8x512xf32> to vector<8x128xf32>
      %52 = arith.negf %51 : vector<8x128xf32>
      %53 = math.exp %52 : vector<8x128xf32>
      %cst_37 = arith.constant 1.000000e+00 : f32
      %54 = vector.broadcast %cst_37 : f32 to vector<8x128xf32>
      %55 = arith.addf %54, %53 : vector<8x128xf32>
      %56 = arith.divf %54, %55 : vector<8x128xf32>
      %57 = arith.mulf %48, %arg15 : vector<8x128xf32>
      %58 = arith.mulf %42, %50 : vector<8x128xf32>
      %59 = arith.addf %57, %58 : vector<8x128xf32>
      %60 = math.tanh %59 : vector<8x128xf32>
      %61 = arith.mulf %56, %60 : vector<8x128xf32>
      %62 = arith.addi %18, %29 : i32
      %63 = vector.broadcast %62 : i32 to vector<8x1xi32>
      %64 = arith.cmpi slt, %63, %14 : vector<8x1xi32>
      %65 = vector.shape_cast %64 : vector<8x1xi1> to vector<8x1xi1>
      %66 = vector.broadcast %65 : vector<8x1xi1> to vector<8x128xi1>
      %67 = arith.select %66, %61, %arg14 : vector<8x128xi1>, vector<8x128xf32>
      %68 = vector.shape_cast %64 : vector<8x1xi1> to vector<8x1xi1>
      %69 = vector.broadcast %68 : vector<8x1xi1> to vector<8x128xi1>
      %70 = arith.select %69, %59, %arg15 : vector<8x128xi1>, vector<8x128xf32>
      %cst_38 = arith.constant 0.000000e+00 : f32
      %71 = vector.shape_cast %64 : vector<8x1xi1> to vector<8x1xi1>
      %72 = vector.broadcast %71 : vector<8x1xi1> to vector<8x128xi1>
      %73 = vector.broadcast %cst_38 : f32 to vector<8x128xf32>
      %74 = arith.select %72, %67, %73 : vector<8x128xi1>, vector<8x128xf32>
      %c0_39 = arith.constant 0 : index
      %75 = arith.index_cast %29 : i32 to index
      %c0_40 = arith.constant 0 : index
      %c0_41 = arith.constant 0 : index
      %76 = vector.load %arg7[%c0_39, %75, %c0_40, %c0_41] : memref<1x8x8x128xf32, #tpu.memory_space<vmem>>, vector<1x1x8x128xf32>
      %77 = vector.shape_cast %76 : vector<1x1x8x128xf32> to vector<8x128xf32>
      %78 = vector.shape_cast %74 : vector<8x128xf32> to vector<1x1x8x128xf32>
      tpu.vector_store %arg7[%c0_39, %75, %c0_40, %c0_41], %78 {strides = array<i32>} : memref<1x8x8x128xf32, #tpu.memory_space<vmem>>, vector<1x1x8x128xf32>,
      scf.yield %67, %70 : vector<8x128xf32>, vector<8x128xf32>
    }
    %c8_i32_22 = arith.constant 8 : i32
    %c0_23 = arith.constant 0 : index
    %c0_24 = arith.constant 0 : index
    %23 = vector.load %arg11[%c0_23, %c0_24] : memref<8x128xf32, #tpu.memory_space<vmem>>, vector<8x128xf32>
    tpu.vector_store %arg11[%c0_23, %c0_24], %22#0 {strides = array<i32>} : memref<8x128xf32, #tpu.memory_space<vmem>>, vector<8x128xf32>,
    %c0_25 = arith.constant 0 : index
    %c0_26 = arith.constant 0 : index
    %24 = vector.load %arg12[%c0_25, %c0_26] : memref<8x128xf32, #tpu.memory_space<vmem>>, vector<8x128xf32>
    tpu.vector_store %arg12[%c0_25, %c0_26], %22#1 {strides = array<i32>} : memref<8x128xf32, #tpu.memory_space<vmem>>, vector<8x128xf32>,
    %c0_i32_27 = arith.constant 0 : i32
    %25 = arith.cmpi eq, %arg1, %c0_i32_27 : i32
    %26 = arith.extui %25 : i1 to i32
    %c0_i32_28 = arith.constant 0 : i32
    %27 = arith.cmpi ne, %26, %c0_i32_28 : i32
    scf.if %27 {
      %c0_29 = arith.constant 0 : index
      %c0_30 = arith.constant 0 : index
      %c0_31 = arith.constant 0 : index
      %28 = vector.load %arg8[%c0_29, %c0_30, %c0_31] : memref<1x8x128xf32, #tpu.memory_space<vmem>>, vector<1x8x128xf32>
      %29 = vector.shape_cast %28 : vector<1x8x128xf32> to vector<8x128xf32>
      %30 = vector.shape_cast %22#0 : vector<8x128xf32> to vector<1x8x128xf32>
      tpu.vector_store %arg8[%c0_29, %c0_30, %c0_31], %30 {strides = array<i32>} : memref<1x8x128xf32, #tpu.memory_space<vmem>>, vector<1x8x128xf32>,
      %c0_32 = arith.constant 0 : index
      %c0_33 = arith.constant 0 : index
      %c0_34 = arith.constant 0 : index
      %31 = vector.load %arg9[%c0_32, %c0_33, %c0_34] : memref<1x8x128xf32, #tpu.memory_space<vmem>>, vector<1x8x128xf32>
      %32 = vector.shape_cast %31 : vector<1x8x128xf32> to vector<8x128xf32>
      %33 = vector.shape_cast %22#1 : vector<8x128xf32> to vector<1x8x128xf32>
      tpu.vector_store %arg9[%c0_32, %c0_33, %c0_34], %33 {strides = array<i32>} : memref<1x8x128xf32, #tpu.memory_space<vmem>>, vector<1x8x128xf32>,
    } else {
    }
    return
  }
  func.func @transform_0(%arg0: i32, %arg1: i32) -> (i32, i32) {
    %c0_i32 = arith.constant 0 : i32
    %c0_i32_0 = arith.constant 0 : i32
    %c0_i32_1 = arith.constant 0 : i32
    return %c0_i32, %c0_i32_0 : i32, i32
  }
  func.func @transform_1(%arg0: i32, %arg1: i32) -> (i32, i32, i32) {
    %c0_i32 = arith.constant 0 : i32
    %0 = arith.subi %c0_i32, %arg1 : i32
    %1 = arith.muli %arg0, %0 : i32
    %c1_i32 = arith.constant 1 : i32
    %2 = arith.subi %c1_i32, %arg0 : i32
    %3 = arith.muli %2, %arg1 : i32
    %4 = arith.addi %1, %3 : i32
    %c0_i32_0 = arith.constant 0 : i32
    %c0_i32_1 = arith.constant 0 : i32
    %c0_i32_2 = arith.constant 0 : i32
    return %4, %c0_i32_0, %c0_i32_1 : i32, i32, i32
  }
  func.func @transform_2(%arg0: i32, %arg1: i32) -> (i32, i32, i32) {
    %c0_i32 = arith.constant 0 : i32
    %c0_i32_0 = arith.constant 0 : i32
    %c0_i32_1 = arith.constant 0 : i32
    return %arg0, %c0_i32, %c0_i32_0 : i32, i32, i32
  }
  func.func @transform_3(%arg0: i32, %arg1: i32) -> (i32, i32, i32) {
    %c0_i32 = arith.constant 0 : i32
    %c0_i32_0 = arith.constant 0 : i32
    %c0_i32_1 = arith.constant 0 : i32
    return %arg0, %c0_i32, %c0_i32_0 : i32, i32, i32
  }
  func.func @transform_4(%arg0: i32, %arg1: i32) -> (i32, i32, i32) {
    %c0_i32 = arith.constant 0 : i32
    %c0_i32_0 = arith.constant 0 : i32
    %c0_i32_1 = arith.constant 0 : i32
    return %arg0, %c0_i32, %c0_i32_0 : i32, i32, i32
  }
  func.func @transform_5(%arg0: i32, %arg1: i32) -> (i32, i32, i32, i32) {
    %c0_i32 = arith.constant 0 : i32
    %0 = arith.subi %c0_i32, %arg1 : i32
    %1 = arith.muli %arg0, %0 : i32
    %c1_i32 = arith.constant 1 : i32
    %2 = arith.subi %c1_i32, %arg0 : i32
    %3 = arith.muli %2, %arg1 : i32
    %4 = arith.addi %1, %3 : i32
    %c0_i32_0 = arith.constant 0 : i32
    %c0_i32_1 = arith.constant 0 : i32
    %c0_i32_2 = arith.constant 0 : i32
    return %arg0, %4, %c0_i32_0, %c0_i32_1 : i32, i32, i32, i32
  }
  func.func @transform_6(%arg0: i32, %arg1: i32) -> (i32, i32, i32) {
    %c0_i32 = arith.constant 0 : i32
    %c0_i32_0 = arith.constant 0 : i32
    %c0_i32_1 = arith.constant 0 : i32
    return %arg0, %c0_i32, %c0_i32_0 : i32, i32, i32
  }
  func.func @transform_7(%arg0: i32, %arg1: i32) -> (i32, i32, i32) {
    %c0_i32 = arith.constant 0 : i32
    %c0_i32_0 = arith.constant 0 : i32
    %c0_i32_1 = arith.constant 0 : i32
    return %arg0, %c0_i32, %c0_i32_0 : i32, i32, i32
  }
}

</mosaic_0001>

<llo_original>
// kernel: tpu_custom_call.1
$region0: #{tpu_custom_call.1}
  #allocation0 [shape = 'u32[]', space=smem, size = 0x4, offset = 0x4, fixed_abs, tag = 'smem constant byte address 0x4 - core index']
  #allocation1 [shape = 'u32[144,128]{1,0:T(1,128)}', space=vmem, size = 0x12000, scoped, tag = 'internal scratch']
  #allocation2 [shape = 'f32[8,8,512]{2,1,0:T(8,128)}', space=vmem, size = 0x20000, scoped, tag = 'scratch operand']
  #allocation3 [shape = 'f32[8,128]{1,0:T(8,128)}', space=vmem, size = 0x1000, scoped, tag = 'scratch operand']
  #allocation4 [shape = 'f32[8,128]{1,0:T(8,128)}', space=vmem, size = 0x1000, scoped, tag = 'scratch operand']
  %s0 = inlined_call_operand.vmem [shape: s32[8,1], index: 0, kind: input, shape index: {}]
  %s1 = inlined_call_operand.hbm [shape: f32[8,8,32], index: 1, kind: input, shape index: {}]
  %s2 = inlined_call_operand.hbm [shape: f32[2,32,512], index: 2, kind: input, shape index: {}]
  %s3 = inlined_call_operand.hbm [shape: f32[2,128,512], index: 3, kind: input, shape index: {}]
  %s4 = inlined_call_operand.vmem [shape: f32[2,1,512], index: 4, kind: input, shape index: {}]
  %s5 = inlined_call_operand.hbm [shape: f32[2,8,8,128], index: 5, kind: output, shape index: {0}]
  %s6 = inlined_call_operand.hbm [shape: f32[2,8,128], index: 6, kind: output, shape index: {1}]
  %s7 = inlined_call_operand.hbm [shape: f32[2,8,128], index: 7, kind: output, shape index: {2}]
  %8 = xla_tuple %s5, %s6, %s7
  %s9 = sld [smem:[#allocation0]]
  $region96: #{tpu_custom_call.1} parent=0
    _
  %s11 = ssub.s32 1, %s9
  %s12 = scalar_select 0, %s11, %s9
  $region1: #{tpu_custom_call.1} parent=0
    #allocation5 [shape = 'u8[65536]{0}', space=vmem, size = 0x10000, scoped, tag = 'input window, operand 1']
    #allocation6 [shape = 's32[2]{0}', space=sflag, size = 0x8, scoped, tag = 'scoped memory for tpu_custom_call.1']
    #allocation7 [shape = 's32[2]{0}', space=sflag, size = 0x8, scoped, tag = 'scoped memory for tpu_custom_call.1']
    #allocation8 [shape = 'u8[131072]{0}', space=vmem, size = 0x20000, scoped, tag = 'input window, operand 2']
    #allocation9 [shape = 's32[2]{0}', space=sflag, size = 0x8, scoped, tag = 'scoped memory for tpu_custom_call.1']
    #allocation10 [shape = 'u8[524288]{0}', space=vmem, size = 0x80000, scoped, tag = 'input window, operand 3']
    #allocation11 [shape = 'u8[65536]{0}', space=vmem, size = 0x10000, scoped, tag = 'output window, operand 0']
    #allocation12 [shape = 'u8[8192]{0}', space=vmem, size = 0x2000, scoped, tag = 'output window, operand 1']
    #allocation13 [shape = 's32[2]{0}', space=sflag, size = 0x8, scoped, tag = 'scoped memory for tpu_custom_call.1']
    #allocation14 [shape = 'u8[8192]{0}', space=vmem, size = 0x2000, scoped, tag = 'output window, operand 2']
    %13 = vsyncpa [#allocation6], 0
    %s14 = scalar_lea.sflag [#allocation6], 1
    %15 = vsyncpa %s14, 0
    %16 = vsyncpa [#allocation9], 0
    %s17 = scalar_lea.sflag [#allocation9], 1
    %18 = vsyncpa %s17, 0
    %19 = vsyncpa [#allocation7], 0
    %s20 = scalar_lea.sflag [#allocation7], 1
    %21 = vsyncpa %s20, 0
    %22 = vsyncpa [#allocation13], 0
    %s23 = scalar_lea.sflag [#allocation13], 1
    %24 = vsyncpa %s23, 0
    loop: start=0, step=1, limit=4
    $region2: #{tpu_custom_call.1} parent=1 // loop_pre_header
      _
    $region3: #{tpu_custom_call.1} parent=1 // loop_header
      %s26 = sphi 0, %s30
      %p27 = scmp.ge.s32.totalorder %s26, 4
      %s33 = sphi 0, %s45
      %s34 = sphi 0, %s41
      %s35 = sphi 0, %s33
      %s36 = sphi 0, %s34
      %s37 = sphi 0, %s35
      %s38 = sphi 0, %s36
      %s46 = sphi 0, %s46
      %s48 = sphi 0, %s46
      %s49 = sphi 0, %s48
      %s63 = sphi 0, %s49
      %s79 = sphi 0, %s81
      %s82 = sphi 0, %s79
      %s83 = sphi 0, %s82
      %s99 = sphi 0, %s83
      %s105 = sphi 0, %s107
      %s108 = sphi 0, %s105
      %s109 = sphi 0, %s108
      %s125 = sphi 0, %s109
      %s131 = sphi 0, %s133
      %s134 = sphi 0, %s131
      %s135 = sphi 0, %s134
      %s151 = sphi 0, %s135
      %s157 = sphi 0, %s159
      %s160 = sphi 0, %s157
      %s161 = sphi 0, %s160
      %s177 = sphi 0, %s161
      %s195 = sphi 0, %s197
      %s198 = sphi 0, %s195
      %s199 = sphi 0, %s198
      %s215 = sphi 0, %s199
      %s221 = sphi 0, %s223
      %s224 = sphi 0, %s221
      %s225 = sphi 0, %s224
      %s241 = sphi 0, %s225
      %s247 = sphi 0, %s249
      %s250 = sphi 0, %s247
      %s251 = sphi 0, %s250
      %s267 = sphi 0, %s251
    $region4: #{tpu_custom_call.1} parent=1 // loop_header_branch
      %29 = sbr.rel (%p27) target = $region8
    $region5: #{tpu_custom_call.1} parent=1 // loop_body
      %s31 = ssub.s32 %s26, 1
      %s32 = ssub.s32 %s26, 2
      %s39 = sadd.s32 1, %s34
      %p40 = scmp.ge.s32.totalorder %s39, 1
      %s41 = scalar_select %p40, 0, %s39
      %s42 = sadd.s32 1, %s33
      %s43 = scalar_select %p40, %s42, %s33
      %p44 = scmp.ge.s32.totalorder %s43, 2
      %s45 = scalar_select %p44, 0, %s43
      %s47 = sadd.s32 %s46, 1
      %p50 = scmp.eq.s32.totalorder %s26, 1
      %p51 = scmp.ne.s32.totalorder %s46, %s48
      %p52 = scmp.eq.s32.totalorder %s26, 0
      %p53 = por %p51, %p52
      %p54 = scmp.ne.s32.totalorder %s46, %s48
      %p55 = scmp.eq.s32.totalorder %s31, 1
      %p56 = por %p54, %p55
      %p57 = scmp.ne.s32.totalorder %s48, %s49
      %p58 = scmp.eq.s32.totalorder %s31, 0
      %p59 = por %p57, %p58
      %p60 = scmp.ne.s32.totalorder %s48, %s49
      %p61 = scmp.eq.s32.totalorder %s32, 1
      %p62 = por %p60, %p61
      %p64 = scmp.ne.s32.totalorder %s49, %s63
      %p65 = scmp.eq.s32.totalorder %s32, 0
      %p66 = por %p64, %p65
      %s67 = ssub.s32 0, %s34
      %s68 = smul.u32 %s33, %s67
      %s69 = ssub.s32 1, %s33
      %s70 = smul.u32 %s69, %s34
      %s71 = sadd.s32 %s68, %s70
      %s72 = ssub.s32 0, %s41
      %s73 = smul.u32 %s45, %s72
      %s74 = ssub.s32 1, %s45
      %s75 = smul.u32 %s74, %s41
      %s76 = sadd.s32 %s73, %s75
      %s77 = ssub.s32 %s71, %s76
      %p78 = scmp.eq.s32.totalorder %s77, 0
      %s80 = sadd.s32 %s79, 1
      %s81 = scalar_select %p78, %s79, %s80
      %p84 = pneg %p78
      %p85 = scmp.eq.s32.totalorder %s26, 1
      %p86 = por %p84, %p85
      %p87 = scmp.ne.s32.totalorder %s79, %s82
      %p88 = scmp.eq.s32.totalorder %s26, 0
      %p89 = por %p87, %p88
      %p90 = scmp.ne.s32.totalorder %s79, %s82
      %p91 = scmp.eq.s32.totalorder %s31, 1
      %p92 = por %p90, %p91
      %p93 = scmp.ne.s32.totalorder %s82, %s83
      %p94 = scmp.eq.s32.totalorder %s31, 0
      %p95 = por %p93, %p94
      %p96 = scmp.ne.s32.totalorder %s82, %s83
      %p97 = scmp.eq.s32.totalorder %s32, 1
      %p98 = por %p96, %p97
      %p100 = scmp.ne.s32.totalorder %s83, %s99
      %p101 = scmp.eq.s32.totalorder %s32, 0
      %p102 = por %p100, %p101
      %s103 = ssub.s32 %s33, %s45
      %p104 = scmp.eq.s32.totalorder %s103, 0
      %s106 = sadd.s32 %s105, 1
      %s107 = scalar_select %p104, %s105, %s106
      %p110 = pneg %p104
      %p111 = scmp.eq.s32.totalorder %s26, 1
      %p112 = por %p110, %p111
      %p113 = scmp.ne.s32.totalorder %s105, %s108
      %p114 = scmp.eq.s32.totalorder %s26, 0
      %p115 = por %p113, %p114
      %p116 = scmp.ne.s32.totalorder %s105, %s108
      %p117 = scmp.eq.s32.totalorder %s31, 1
      %p118 = por %p116, %p117
      %p119 = scmp.ne.s32.totalorder %s108, %s109
      %p120 = scmp.eq.s32.totalorder %s31, 0
      %p121 = por %p119, %p120
      %p122 = scmp.ne.s32.totalorder %s108, %s109
      %p123 = scmp.eq.s32.totalorder %s32, 1
      %p124 = por %p122, %p123
      %p126 = scmp.ne.s32.totalorder %s109, %s125
      %p127 = scmp.eq.s32.totalorder %s32, 0
      %p128 = por %p126, %p127
      %s129 = ssub.s32 %s33, %s45
      %p130 = scmp.eq.s32.totalorder %s129, 0
      %s132 = sadd.s32 %s131, 1
      %s133 = scalar_select %p130, %s131, %s132
      %p136 = pneg %p130
      %p137 = scmp.eq.s32.totalorder %s26, 1
      %p138 = por %p136, %p137
      %p139 = scmp.ne.s32.totalorder %s131, %s134
      %p140 = scmp.eq.s32.totalorder %s26, 0
      %p141 = por %p139, %p140
      %p142 = scmp.ne.s32.totalorder %s131, %s134
      %p143 = scmp.eq.s32.totalorder %s31, 1
      %p144 = por %p142, %p143
      %p145 = scmp.ne.s32.totalorder %s134, %s135
      %p146 = scmp.eq.s32.totalorder %s31, 0
      %p147 = por %p145, %p146
      %p148 = scmp.ne.s32.totalorder %s134, %s135
      %p149 = scmp.eq.s32.totalorder %s32, 1
      %p150 = por %p148, %p149
      %p152 = scmp.ne.s32.totalorder %s135, %s151
      %p153 = scmp.eq.s32.totalorder %s32, 0
      %p154 = por %p152, %p153
      %s155 = ssub.s32 %s33, %s45
      %p156 = scmp.eq.s32.totalorder %s155, 0
      %s158 = sadd.s32 %s157, 1
      %s159 = scalar_select %p156, %s157, %s158
      %p162 = pneg %p156
      %p163 = scmp.eq.s32.totalorder %s26, 1
      %p164 = por %p162, %p163
      %p165 = scmp.ne.s32.totalorder %s157, %s160
      %p166 = scmp.eq.s32.totalorder %s26, 0
      %p167 = por %p165, %p166
      %p168 = scmp.ne.s32.totalorder %s157, %s160
      %p169 = scmp.eq.s32.totalorder %s31, 1
      %p170 = por %p168, %p169
      %p171 = scmp.ne.s32.totalorder %s160, %s161
      %p172 = scmp.eq.s32.totalorder %s31, 0
      %p173 = por %p171, %p172
      %p174 = scmp.ne.s32.totalorder %s160, %s161
      %p175 = scmp.eq.s32.totalorder %s32, 1
      %p176 = por %p174, %p175
      %p178 = scmp.ne.s32.totalorder %s161, %s177
      %p179 = scmp.eq.s32.totalorder %s32, 0
      %p180 = por %p178, %p179
      %s181 = ssub.s32 0, %s34
      %s182 = smul.u32 %s33, %s181
      %s183 = ssub.s32 1, %s33
      %s184 = smul.u32 %s183, %s34
      %s185 = sadd.s32 %s182, %s184
      %s186 = ssub.s32 0, %s41
      %s187 = smul.u32 %s45, %s186
      %s188 = ssub.s32 1, %s45
      %s189 = smul.u32 %s188, %s41
      %s190 = sadd.s32 %s187, %s189
      %s191 = ssub.s32 %s33, %s45
      %s192 = ssub.s32 %s185, %s190
      %s193 = sor.u32 %s191, %s192
      %p194 = scmp.eq.s32.totalorder %s193, 0
      %s196 = sadd.s32 %s195, 1
      %s197 = scalar_select %p194, %s195, %s196
      %p200 = pneg %p194
      %p201 = scmp.eq.s32.totalorder %s26, 1
      %p202 = por %p200, %p201
      %p203 = scmp.ne.s32.totalorder %s195, %s198
      %p204 = scmp.eq.s32.totalorder %s26, 0
      %p205 = por %p203, %p204
      %p206 = scmp.ne.s32.totalorder %s195, %s198
      %p207 = scmp.eq.s32.totalorder %s31, 1
      %p208 = por %p206, %p207
      %p209 = scmp.ne.s32.totalorder %s198, %s199
      %p210 = scmp.eq.s32.totalorder %s31, 0
      %p211 = por %p209, %p210
      %p212 = scmp.ne.s32.totalorder %s198, %s199
      %p213 = scmp.eq.s32.totalorder %s32, 1
      %p214 = por %p212, %p213
      %p216 = scmp.ne.s32.totalorder %s199, %s215
      %p217 = scmp.eq.s32.totalorder %s32, 0
      %p218 = por %p216, %p217
      %s219 = ssub.s32 %s33, %s45
      %p220 = scmp.eq.s32.totalorder %s219, 0
      %s222 = sadd.s32 %s221, 1
      %s223 = scalar_select %p220, %s221, %s222
      %p226 = pneg %p220
      %p227 = scmp.eq.s32.totalorder %s26, 1
      %p228 = por %p226, %p227
      %p229 = scmp.ne.s32.totalorder %s221, %s224
      %p230 = scmp.eq.s32.totalorder %s26, 0
      %p231 = por %p229, %p230
      %p232 = scmp.ne.s32.totalorder %s221, %s224
      %p233 = scmp.eq.s32.totalorder %s31, 1
      %p234 = por %p232, %p233
      %p235 = scmp.ne.s32.totalorder %s224, %s225
      %p236 = scmp.eq.s32.totalorder %s31, 0
      %p237 = por %p235, %p236
      %p238 = scmp.ne.s32.totalorder %s224, %s225
      %p239 = scmp.eq.s32.totalorder %s32, 1
      %p240 = por %p238, %p239
      %p242 = scmp.ne.s32.totalorder %s225, %s241
      %p243 = scmp.eq.s32.totalorder %s32, 0
      %p244 = por %p242, %p243
      %s245 = ssub.s32 %s33, %s45
      %p246 = scmp.eq.s32.totalorder %s245, 0
      %s248 = sadd.s32 %s247, 1
      %s249 = scalar_select %p246, %s247, %s248
      %p252 = pneg %p246
      %p253 = scmp.eq.s32.totalorder %s26, 1
      %p254 = por %p252, %p253
      %p255 = scmp.ne.s32.totalorder %s247, %s250
      %p256 = scmp.eq.s32.totalorder %s26, 0
      %p257 = por %p255, %p256
      %p258 = scmp.ne.s32.totalorder %s247, %s250
      %p259 = scmp.eq.s32.totalorder %s31, 1
      %p260 = por %p258, %p259
      %p261 = scmp.ne.s32.totalorder %s250, %s251
      %p262 = scmp.eq.s32.totalorder %s31, 0
      %p263 = por %p261, %p262
      %p264 = scmp.ne.s32.totalorder %s250, %s251
      %p265 = scmp.eq.s32.totalorder %s32, 1
      %p266 = por %p264, %p265
      %p268 = scmp.ne.s32.totalorder %s251, %s267
      %p269 = scmp.eq.s32.totalorder %s32, 0
      %p270 = por %p268, %p269
      %p271 = scmp.le.s32.totalorder 1, %s26
      %p272 = scmp.lt.s32.totalorder %s26, 3
      %p273 = pnand %p271, %p272
      %p274 = pneg %p273
      // Predicated region
      $region9: #{tpu_custom_call.1} parent=5 // pred_check
        _
      $region10: #{tpu_custom_call.1} parent=5 // pred_check_branch
        %276 = sbr.rel (%p273) target = $region12
      $region11: #{tpu_custom_call.1} parent=5 // pred_region
        %s277 = ssub.s32 %s26, 1
        // Predicated region
        $region13: #{tpu_custom_call.1} parent=11 // pred_check
          %p278 = pneg %p59
        $region14: #{tpu_custom_call.1} parent=11 // pred_check_branch
          %280 = sbr.rel (%p278) target = $region16
        $region15: #{tpu_custom_call.1} parent=11 // pred_region
          _
        $region16: #{tpu_custom_call.1} parent=11 // pred_fallthru
          _
      $region12: #{tpu_custom_call.1} parent=5 // pred_fallthru
        _
      %p281 = scmp.lt.s32.totalorder %s26, 2
      // Predicated region
      $region17: #{tpu_custom_call.1} parent=5 // pred_check
        %p282 = pneg %p281
      $region18: #{tpu_custom_call.1} parent=5 // pred_check_branch
        %284 = sbr.rel (%p282) target = $region20
      $region19: #{tpu_custom_call.1} parent=5 // pred_region
        // Predicated region
        $region21: #{tpu_custom_call.1} parent=19 // pred_check
          %p285 = pneg %p89
        $region22: #{tpu_custom_call.1} parent=19 // pred_check_branch
          %287 = sbr.rel (%p285) target = $region24
        $region23: #{tpu_custom_call.1} parent=19 // pred_region
          %s288 = sand.u32 %s79, 1
          %s289 = scalar_lea.sflag [#allocation6], %s288
          %s290 = sand.u32 %s79, 1
          %s291 = smul.addr %s290, 64
          %s292 = scalar_lea.vmem [#allocation5], %s291
          %s293 = ssub.s32 0, %s34
          %s294 = smul.u32 %s33, %s293
          %s295 = ssub.s32 1, %s33
          %s296 = smul.u32 %s295, %s34
          %s297 = sadd.s32 %s294, %s296
          %s298 = smul.u32 8, %s297
          %s300 = ssub.s32 1024, 1024
          %301 = vsyncadd %s289, %s300
          %s302 = smul.addr %s298, 128
          %s303 = scalar_lea.hbm %s1, %s302
          %s304 = sshll.u32 %s292, 4
          %s305 = int_to_ptr.vmem [resolvable:$true] %s304
          %310 = dma.hbm_to_vmem [thread:$0]  %s303, 1024, %s305, %s289, 128, 128, 8
        $region24: #{tpu_custom_call.1} parent=19 // pred_fallthru
          _
        // Predicated region
        $region25: #{tpu_custom_call.1} parent=19 // pred_check
          %p311 = pneg %p115
        $region26: #{tpu_custom_call.1} parent=19 // pred_check_branch
          %313 = sbr.rel (%p311) target = $region28
        $region27: #{tpu_custom_call.1} parent=19 // pred_region
          %s314 = sand.u32 %s26, 1
          %s315 = scalar_lea.sflag [#allocation9], %s314
          %s316 = sand.u32 %s105, 1
          %s317 = smul.addr %s316, 128
          %s318 = scalar_lea.vmem [#allocation8], %s317
          %s320 = ssub.s32 2048, 2048
          %321 = vsyncadd %s315, %s320
          %s322 = smul.addr %s33, 16
          %s323 = smul.addr %s322, 128
          %s324 = scalar_lea.hbm %s2, %s323
          %s325 = sshll.u32 %s318, 4
          %s326 = int_to_ptr.vmem [resolvable:$true] %s325
          %331 = dma.hbm_to_vmem [thread:$0]  %s324, 2048, %s326, %s315, 512, 512, 32
        $region28: #{tpu_custom_call.1} parent=19 // pred_fallthru
          _
        // Predicated region
        $region29: #{tpu_custom_call.1} parent=19 // pred_check
          %p332 = pneg %p141
        $region30: #{tpu_custom_call.1} parent=19 // pred_check_branch
          %334 = sbr.rel (%p332) target = $region32
        $region31: #{tpu_custom_call.1} parent=19 // pred_region
          %s335 = sand.u32 %s26, 1
          %s336 = scalar_lea.sflag [#allocation9], %s335
          %s337 = sand.u32 %s131, 1
          %s338 = smul.addr %s337, 512
          %s339 = scalar_lea.vmem [#allocation10], %s338
          %s341 = ssub.s32 8192, 8192
          %342 = vsyncadd %s336, %s341
          %s343 = smul.addr %s33, 64
          %s344 = smul.addr %s343, 128
          %s345 = scalar_lea.hbm %s3, %s344
          %s346 = sshll.u32 %s339, 4
          %s347 = int_to_ptr.vmem [resolvable:$true] %s346
          %352 = dma.hbm_to_vmem [thread:$0]  %s345, 8192, %s347, %s336, 512, 512, 32
        $region32: #{tpu_custom_call.1} parent=19 // pred_fallthru
          _
        // Predicated region
        $region33: #{tpu_custom_call.1} parent=19 // pred_check
          %p353 = pneg %p167
        $region34: #{tpu_custom_call.1} parent=19 // pred_check_branch
          %355 = sbr.rel (%p353) target = $region36
        $region35: #{tpu_custom_call.1} parent=19 // pred_region
          %p356 = scmp.lt.s32.totalorder %s33, 1
          %s357 = scalar_select %p356, %s33, 1
          %s358 = smul.addr %s357, 4
          %s359 = scalar_lea.vmem %s4, %s358
        $region36: #{tpu_custom_call.1} parent=19 // pred_fallthru
          _
      $region20: #{tpu_custom_call.1} parent=5 // pred_fallthru
        _
      %p360 = scmp.le.s32.totalorder 1, %s26
      %p361 = scmp.lt.s32.totalorder %s26, 3
      %p362 = pnand %p360, %p361
      %p363 = pneg %p362
      // Predicated region
      $region37: #{tpu_custom_call.1} parent=5 // pred_check
        _
      $region38: #{tpu_custom_call.1} parent=5 // pred_check_branch
        %365 = sbr.rel (%p362) target = $region40
      $region39: #{tpu_custom_call.1} parent=5 // pred_region
        %s366 = ssub.s32 %s26, 1
        %s367 = sand.u32 %s82, 1
        %s368 = scalar_lea.sflag [#allocation6], %s367
        %s369 = sand.u32 %s82, 1
        %s370 = smul.addr %s369, 64
        %s371 = scalar_lea.vmem [#allocation5], %s370
        // Predicated region
        $region41: #{tpu_custom_call.1} parent=39 // pred_check
          %p372 = pneg %p95
        $region42: #{tpu_custom_call.1} parent=39 // pred_check_branch
          %374 = sbr.rel (%p372) target = $region44
        $region43: #{tpu_custom_call.1} parent=39 // pred_region
          %375 = dma.done %s368, 1024
        $region44: #{tpu_custom_call.1} parent=39 // pred_fallthru
          _
        %s376 = sand.u32 %s31, 1
        %s377 = scalar_lea.sflag [#allocation9], %s376
        %s378 = sand.u32 %s108, 1
        %s379 = smul.addr %s378, 128
        %s380 = scalar_lea.vmem [#allocation8], %s379
        // Predicated region
        $region45: #{tpu_custom_call.1} parent=39 // pred_check
          %p381 = pneg %p121
        $region46: #{tpu_custom_call.1} parent=39 // pred_check_branch
          %383 = sbr.rel (%p381) target = $region48
        $region47: #{tpu_custom_call.1} parent=39 // pred_region
          %384 = dma.done %s377, 2048
        $region48: #{tpu_custom_call.1} parent=39 // pred_fallthru
          _
        %s385 = sand.u32 %s31, 1
        %s386 = scalar_lea.sflag [#allocation9], %s385
        %s387 = sand.u32 %s134, 1
        %s388 = smul.addr %s387, 512
        %s389 = scalar_lea.vmem [#allocation10], %s388
        // Predicated region
        $region49: #{tpu_custom_call.1} parent=39 // pred_check
          %p390 = pneg %p147
        $region50: #{tpu_custom_call.1} parent=39 // pred_check_branch
          %392 = sbr.rel (%p390) target = $region52
        $region51: #{tpu_custom_call.1} parent=39 // pred_region
          %393 = dma.done %s386, 8192
        $region52: #{tpu_custom_call.1} parent=39 // pred_fallthru
          _
        %p394 = pneg %p59
        %p395 = pneg %p56
        %s396 = sand.u32 %s82, 1
        %s397 = scalar_lea.sflag [#allocation6], %s396
        %s398 = sand.u32 %s82, 1
        %s399 = smul.addr %s398, 64
        %s400 = scalar_lea.vmem [#allocation5], %s399
        %p401 = pneg %p95
        %p402 = pneg %p92
        %s403 = sand.u32 %s31, 1
        %s404 = scalar_lea.sflag [#allocation9], %s403
        %s405 = sand.u32 %s108, 1
        %s406 = smul.addr %s405, 128
        %s407 = scalar_lea.vmem [#allocation8], %s406
        %p408 = pneg %p121
        %p409 = pneg %p118
        %s410 = sand.u32 %s31, 1
        %s411 = scalar_lea.sflag [#allocation9], %s410
        %s412 = sand.u32 %s134, 1
        %s413 = smul.addr %s412, 512
        %s414 = scalar_lea.vmem [#allocation10], %s413
        %p415 = pneg %p147
        %p416 = pneg %p144
        %p417 = scmp.lt.s32.totalorder %s35, 1
        %s418 = scalar_select %p417, %s35, 1
        %s419 = smul.addr %s418, 4
        %s420 = scalar_lea.vmem %s4, %s419
        %p421 = pneg %p173
        %p422 = pneg %p170
        %p423 = pneg %p211
        %p424 = pneg %p208
        %s425 = sand.u32 %s198, 1
        %s426 = scalar_lea.sflag [#allocation7], %s425
        %s427 = sand.u32 %s198, 1
        %s428 = smul.addr %s427, 64
        %s429 = scalar_lea.vmem [#allocation11], %s428
        %p430 = pneg %p237
        %p431 = pneg %p234
        %s432 = sand.u32 %s31, 1
        %s433 = scalar_lea.sflag [#allocation13], %s432
        %s434 = sand.u32 %s224, 1
        %s435 = smul.addr %s434, 8
        %s436 = scalar_lea.vmem [#allocation12], %s435
        %p437 = pneg %p263
        %p438 = pneg %p260
        %s439 = sand.u32 %s31, 1
        %s440 = scalar_lea.sflag [#allocation13], %s439
        %s441 = sand.u32 %s250, 1
        %s442 = smul.addr %s441, 8
        %s443 = scalar_lea.vmem [#allocation14], %s442
        %s444 = ssub.s32 0, %s36
        %s445 = smul.u32 %s35, %s444
        %s446 = ssub.s32 1, %s35
        %s447 = smul.u32 %s446, %s36
        %s448 = sadd.s32 %s445, %s447
        %s449 = smul.u32 8, %s448
        %p450 = scmp.lt.s32.totalorder %s35, 1
        %s451 = scalar_select %p450, %s35, 1
        %s452 = smul.addr %s451, 4
        %s453 = scalar_lea.vmem %s4, %s452
        %s454 = ssub.s32 0, %s36
        %s455 = smul.u32 %s35, %s454
        %s456 = ssub.s32 1, %s35
        %s457 = smul.u32 %s456, %s36
        %s458 = sadd.s32 %s455, %s457
        %s459 = smul.u32 8, %s458
        %p460 = scmp.eq.s32.totalorder %s36, 0
        // Predicated region
        $region53: #{tpu_custom_call.1} parent=39 // pred_check
          %p461 = pneg %p460
        $region54: #{tpu_custom_call.1} parent=39 // pred_check_branch
          %463 = sbr.rel (%p461) target = $region56
        $region55: #{tpu_custom_call.1} parent=39 // pred_region
          %464 = vst [vmem:[#allocation3] sm:$0xff] 0.0
          %465 = vst [vmem:[#allocation4] sm:$0xff] 0.0
        $region56: #{tpu_custom_call.1} parent=39 // pred_fallthru
          _
        %v466 = vld [vmem:[%s371] sm:$0xff]
        %v467 = vld [vmem:[%s371 + $0x8] sm:$0xff]
        %v468 = vld [vmem:[%s371 + $0x10] sm:$0xff]
        %v469 = vld [vmem:[%s371 + $0x18] sm:$0xff]
        %v470 = vld [vmem:[%s371 + $0x20] sm:$0xff]
        %v471 = vld [vmem:[%s371 + $0x28] sm:$0xff]
        %v472 = vld [vmem:[%s371 + $0x30] sm:$0xff]
        %v473 = vld [vmem:[%s371 + $0x38] sm:$0xff]
        %v474 = vld [vmem:[%s380] sm:$0xff]
        %v475 = vld [vmem:[%s380 + $0x8] sm:$0xff]
        %v476 = vld [vmem:[%s380 + $0x10] sm:$0xff]
        %v477 = vld [vmem:[%s380 + $0x18] sm:$0xff]
        %v478 = vld [vmem:[%s380 + $0x20] sm:$0xff]
        %v479 = vld [vmem:[%s380 + $0x28] sm:$0xff]
        %v480 = vld [vmem:[%s380 + $0x30] sm:$0xff]
        %v481 = vld [vmem:[%s380 + $0x38] sm:$0xff]
        %v482 = vld [vmem:[%s380 + $0x40] sm:$0xff]
        %v483 = vld [vmem:[%s380 + $0x48] sm:$0xff]
        %v484 = vld [vmem:[%s380 + $0x50] sm:$0xff]
        %v485 = vld [vmem:[%s380 + $0x58] sm:$0xff]
        %v486 = vld [vmem:[%s380 + $0x60] sm:$0xff]
        %v487 = vld [vmem:[%s380 + $0x68] sm:$0xff]
        %v488 = vld [vmem:[%s380 + $0x70] sm:$0xff]
        %v489 = vld [vmem:[%s380 + $0x78] sm:$0xff]
        %v490 = vld [vmem:[%s453] sm:$0xf]
        %v492 = vlaneseq
        %v493 = vshrl.u32 %v492, 7
        %v494 = vsub.s32 0, %v493
        %v495 = vrot.slane %v490, %v494
        %v496 = vlaneseq
        %v497 = vshrl.u32 %v496, 7
        %v498 = vsub.s32 1, %v497
        %v499 = vrot.slane %v490, %v498
        %v500 = vlaneseq
        %v501 = vshrl.u32 %v500, 7
        %v502 = vsub.s32 2, %v501
        %v503 = vrot.slane %v490, %v502
        %v504 = vlaneseq
        %v505 = vshrl.u32 %v504, 7
        %v506 = vsub.s32 3, %v505
        %v507 = vrot.slane %v490, %v506
        %vm512 = vcmask 261120
        %v514 = vsel %vm512, %v466, 0
        %v517 = vsel %vm512, %v467, 0
        %v520 = vsel %vm512, %v468, 0
        %v523 = vsel %vm512, %v469, 0
        %v526 = vsel %vm512, %v470, 0
        %v529 = vsel %vm512, %v471, 0
        %v532 = vsel %vm512, %v472, 0
        %v535 = vsel %vm512, %v473, 0
        %537 = vmatprep.subr.mxu0 %v475
        %538 = vmatpush1.msra.mxu0 %v474
        %539 = vmatprep.subr.mxu0 %v479
        %540 = vmatpush1.msra.mxu0 %v478
        %541 = vmatprep.subr.mxu0 %v483
        %542 = vmatpush1.msra.mxu0 %v482
        %543 = vmatprep.subr.mxu0 %v487
        %544 = vmatpush1.msra.mxu0 %v486
        %545 = vmatprep.subr.mxu0 0.0
        %546 = vmatpush1.msra.mxu0 0.0
        %547 = vmatprep.subr.mxu0 0.0
        %548 = vmatpush1.msra.mxu0 0.0
        %549 = vmatprep.subr.mxu0 0.0
        %550 = vmatpush1.msra.mxu0 0.0
        %551 = vmatprep.subr.mxu0 0.0
        %552 = vmatpush1.msra.mxu0 0.0
        %553 = vmatprep.subr.mxu0 0.0
        %554 = vmatpush1.msra.mxu0 0.0
        %555 = vmatprep.subr.mxu0 0.0
        %556 = vmatpush1.msra.mxu0 0.0
        %557 = vmatprep.subr.mxu0 0.0
        %558 = vmatpush1.msra.mxu0 0.0
        %559 = vmatprep.subr.mxu0 0.0
        %560 = vmatpush1.msra.mxu0 0.0
        %561 = vmatprep.subr.mxu0 0.0
        %562 = vmatpush1.msra.mxu0 0.0
        %563 = vmatprep.subr.mxu0 0.0
        %564 = vmatpush1.msra.mxu0 0.0
        %565 = vmatprep.subr.mxu0 0.0
        %566 = vmatpush1.msra.mxu0 0.0
        %567 = vmatprep.subr.mxu0 0.0
        %568 = vmatpush1.msra.mxu0 0.0
        %569 = vmatprep.subr.mxu0 0.0
        %570 = vmatpush1.msra.mxu0 0.0
        %571 = vmatprep.subr.mxu0 0.0
        %572 = vmatpush1.msra.mxu0 0.0
        %573 = vmatprep.subr.mxu0 0.0
        %574 = vmatpush1.msra.mxu0 0.0
        %575 = vmatprep.subr.mxu0 0.0
        %576 = vmatpush1.msra.mxu0 0.0
        %577 = vmatprep.subr.mxu0 0.0
        %578 = vmatpush1.msra.mxu0 0.0
        %579 = vmatprep.subr.mxu0 0.0
        %580 = vmatpush1.msra.mxu0 0.0
        %581 = vmatprep.subr.mxu0 0.0
        %582 = vmatpush1.msra.mxu0 0.0
        %583 = vmatprep.subr.mxu0 0.0
        %584 = vmatpush1.msra.mxu0 0.0
        %585 = vmatprep.subr.mxu0 0.0
        %586 = vmatpush1.msra.mxu0 0.0
        %587 = vmatprep.subr.mxu0 0.0
        %588 = vmatpush1.msra.mxu0 0.0
        %589 = vmatprep.subr.mxu0 0.0
        %590 = vmatpush1.msra.mxu0 0.0
        %591 = vmatprep.subr.mxu0 0.0
        %592 = vmatpush1.msra.mxu0 0.0
        %593 = vmatprep.subr.mxu0 0.0
        %594 = vmatpush1.msra.mxu0 0.0
        %595 = vmatprep.subr.mxu0 0.0
        %596 = vmatpush1.msra.mxu0 0.0
        %597 = vmatprep.subr.mxu0 0.0
        %598 = vmatpush1.msra.mxu0 0.0
        %599 = vmatprep.subr.mxu0 0.0
        %600 = vmatpush1.msra.mxu0 0.0
        %601 = vmatprep.mubr.f32.mxu0 0.0
        %602 = vmatmul.mubr.f32.gmra.mrb[0].mxu0 %v514
        %v603 = vpop.f32.mrb[0].mxu0
        %v604 = vadd.f32 %v495, %v603
        %v605 = vpop.f32.mrb[0].mxu0
        %v606 = vadd.f32 %v499, %v605
        %607 = vmatprep.mubr.f32.mxu0 0.0
        %608 = vmatmul.mubr.f32.gmra.mrb[0].mxu0 %v517
        %v609 = vpop.f32.mrb[0].mxu0
        %v610 = vadd.f32 %v495, %v609
        %v611 = vpop.f32.mrb[0].mxu0
        %v612 = vadd.f32 %v499, %v611
        %613 = vmatprep.mubr.f32.mxu0 0.0
        %614 = vmatmul.mubr.f32.gmra.mrb[0].mxu0 %v520
        %v615 = vpop.f32.mrb[0].mxu0
        %v616 = vadd.f32 %v495, %v615
        %v617 = vpop.f32.mrb[0].mxu0
        %v618 = vadd.f32 %v499, %v617
        %619 = vmatprep.mubr.f32.mxu0 0.0
        %620 = vmatmul.mubr.f32.gmra.mrb[0].mxu0 %v523
        %v621 = vpop.f32.mrb[0].mxu0
        %v622 = vadd.f32 %v495, %v621
        %v623 = vpop.f32.mrb[0].mxu0
        %v624 = vadd.f32 %v499, %v623
        %625 = vmatprep.mubr.f32.mxu0 0.0
        %626 = vmatmul.mubr.f32.gmra.mrb[0].mxu0 %v526
        %v627 = vpop.f32.mrb[0].mxu0
        %v628 = vadd.f32 %v495, %v627
        %v629 = vpop.f32.mrb[0].mxu0
        %v630 = vadd.f32 %v499, %v629
        %631 = vmatprep.mubr.f32.mxu0 0.0
        %632 = vmatmul.mubr.f32.gmra.mrb[0].mxu0 %v529
        %v633 = vpop.f32.mrb[0].mxu0
        %v634 = vadd.f32 %v495, %v633
        %v635 = vpop.f32.mrb[0].mxu0
        %v636 = vadd.f32 %v499, %v635
        %637 = vmatprep.mubr.f32.mxu0 0.0
        %638 = vmatmul.mubr.f32.gmra.mrb[0].mxu0 %v532
        %v639 = vpop.f32.mrb[0].mxu0
        %v640 = vadd.f32 %v495, %v639
        %v641 = vpop.f32.mrb[0].mxu0
        %v642 = vadd.f32 %v499, %v641
        %643 = vmatprep.mubr.f32.mxu0 0.0
        %644 = vmatmul.mubr.f32.gmra.mrb[0].mxu0 %v535
        %v645 = vpop.f32.mrb[0].mxu0
        %v646 = vadd.f32 %v495, %v645
        %v647 = vpop.f32.mrb[0].mxu0
        %v648 = vadd.f32 %v499, %v647
        %649 = vdwg.mxu0
        %650 = vmatprep.subr.mxu0 %v477
        %651 = vmatpush1.msra.mxu0 %v476
        %652 = vmatprep.subr.mxu0 %v481
        %653 = vmatpush1.msra.mxu0 %v480
        %654 = vmatprep.subr.mxu0 %v485
        %655 = vmatpush1.msra.mxu0 %v484
        %656 = vmatprep.subr.mxu0 %v489
        %657 = vmatpush1.msra.mxu0 %v488
        %658 = vmatprep.subr.mxu0 0.0
        %659 = vmatpush1.msra.mxu0 0.0
        %660 = vmatprep.subr.mxu0 0.0
        %661 = vmatpush1.msra.mxu0 0.0
        %662 = vmatprep.subr.mxu0 0.0
        %663 = vmatpush1.msra.mxu0 0.0
        %664 = vmatprep.subr.mxu0 0.0
        %665 = vmatpush1.msra.mxu0 0.0
        %666 = vmatprep.subr.mxu0 0.0
        %667 = vmatpush1.msra.mxu0 0.0
        %668 = vmatprep.subr.mxu0 0.0
        %669 = vmatpush1.msra.mxu0 0.0
        %670 = vmatprep.subr.mxu0 0.0
        %671 = vmatpush1.msra.mxu0 0.0
        %672 = vmatprep.subr.mxu0 0.0
        %673 = vmatpush1.msra.mxu0 0.0
        %674 = vmatprep.subr.mxu0 0.0
        %675 = vmatpush1.msra.mxu0 0.0
        %676 = vmatprep.subr.mxu0 0.0
        %677 = vmatpush1.msra.mxu0 0.0
        %678 = vmatprep.subr.mxu0 0.0
        %679 = vmatpush1.msra.mxu0 0.0
        %680 = vmatprep.subr.mxu0 0.0
        %681 = vmatpush1.msra.mxu0 0.0
        %682 = vmatprep.subr.mxu0 0.0
        %683 = vmatpush1.msra.mxu0 0.0
        %684 = vmatprep.subr.mxu0 0.0
        %685 = vmatpush1.msra.mxu0 0.0
        %686 = vmatprep.subr.mxu0 0.0
        %687 = vmatpush1.msra.mxu0 0.0
        %688 = vmatprep.subr.mxu0 0.0
        %689 = vmatpush1.msra.mxu0 0.0
        %690 = vmatprep.subr.mxu0 0.0
        %691 = vmatpush1.msra.mxu0 0.0
        %692 = vmatprep.subr.mxu0 0.0
        %693 = vmatpush1.msra.mxu0 0.0
        %694 = vmatprep.subr.mxu0 0.0
        %695 = vmatpush1.msra.mxu0 0.0
        %696 = vmatprep.subr.mxu0 0.0
        %697 = vmatpush1.msra.mxu0 0.0
        %698 = vmatprep.subr.mxu0 0.0
        %699 = vmatpush1.msra.mxu0 0.0
        %700 = vmatprep.subr.mxu0 0.0
        %701 = vmatpush1.msra.mxu0 0.0
        %702 = vmatprep.subr.mxu0 0.0
        %703 = vmatpush1.msra.mxu0 0.0
        %704 = vmatprep.subr.mxu0 0.0
        %705 = vmatpush1.msra.mxu0 0.0
        %706 = vmatprep.subr.mxu0 0.0
        %707 = vmatpush1.msra.mxu0 0.0
        %708 = vmatprep.subr.mxu0 0.0
        %709 = vmatpush1.msra.mxu0 0.0
        %710 = vmatprep.subr.mxu0 0.0
        %711 = vmatpush1.msra.mxu0 0.0
        %712 = vmatprep.subr.mxu0 0.0
        %713 = vmatpush1.msra.mxu0 0.0
        %714 = vmatprep.mubr.f32.mxu0 0.0
        %715 = vmatmul.mubr.f32.gmra.mrb[0].mxu0 %v514
        %v716 = vpop.f32.mrb[0].mxu0
        %v717 = vadd.f32 %v503, %v716
        %v718 = vpop.f32.mrb[0].mxu0
        %v719 = vadd.f32 %v507, %v718
        %720 = vmatprep.mubr.f32.mxu0 0.0
        %721 = vmatmul.mubr.f32.gmra.mrb[0].mxu0 %v517
        %v722 = vpop.f32.mrb[0].mxu0
        %v723 = vadd.f32 %v503, %v722
        %v724 = vpop.f32.mrb[0].mxu0
        %v725 = vadd.f32 %v507, %v724
        %726 = vmatprep.mubr.f32.mxu0 0.0
        %727 = vmatmul.mubr.f32.gmra.mrb[0].mxu0 %v520
        %v728 = vpop.f32.mrb[0].mxu0
        %v729 = vadd.f32 %v503, %v728
        %v730 = vpop.f32.mrb[0].mxu0
        %v731 = vadd.f32 %v507, %v730
        %732 = vmatprep.mubr.f32.mxu0 0.0
        %733 = vmatmul.mubr.f32.gmra.mrb[0].mxu0 %v523
        %v734 = vpop.f32.mrb[0].mxu0
        %v735 = vadd.f32 %v503, %v734
        %v736 = vpop.f32.mrb[0].mxu0
        %v737 = vadd.f32 %v507, %v736
        %738 = vmatprep.mubr.f32.mxu0 0.0
        %739 = vmatmul.mubr.f32.gmra.mrb[0].mxu0 %v526
        %v740 = vpop.f32.mrb[0].mxu0
        %v741 = vadd.f32 %v503, %v740
        %v742 = vpop.f32.mrb[0].mxu0
        %v743 = vadd.f32 %v507, %v742
        %744 = vmatprep.mubr.f32.mxu0 0.0
        %745 = vmatmul.mubr.f32.gmra.mrb[0].mxu0 %v529
        %v746 = vpop.f32.mrb[0].mxu0
        %v747 = vadd.f32 %v503, %v746
        %v748 = vpop.f32.mrb[0].mxu0
        %v749 = vadd.f32 %v507, %v748
        %750 = vmatprep.mubr.f32.mxu0 0.0
        %751 = vmatmul.mubr.f32.gmra.mrb[0].mxu0 %v532
        %v752 = vpop.f32.mrb[0].mxu0
        %v753 = vadd.f32 %v503, %v752
        %v754 = vpop.f32.mrb[0].mxu0
        %v755 = vadd.f32 %v507, %v754
        %756 = vmatprep.mubr.f32.mxu0 0.0
        %757 = vmatmul.mubr.f32.gmra.mrb[0].mxu0 %v535
        %v758 = vpop.f32.mrb[0].mxu0
        %v759 = vadd.f32 %v503, %v758
        %v760 = vpop.f32.mrb[0].mxu0
        %v761 = vadd.f32 %v507, %v760
        %762 = vdwg.mxu0
        %763 = vst [vmem:[#allocation2] sm:$0xff] %v604
        %764 = vst [vmem:[#allocation2 + $0x8] sm:$0xff] %v606
        %765 = vst [vmem:[#allocation2 + $0x10] sm:$0xff] %v717
        %766 = vst [vmem:[#allocation2 + $0x18] sm:$0xff] %v719
        %767 = vst [vmem:[#allocation2 + $0x20] sm:$0xff] %v610
        %768 = vst [vmem:[#allocation2 + $0x28] sm:$0xff] %v612
        %769 = vst [vmem:[#allocation2 + $0x30] sm:$0xff] %v723
        %770 = vst [vmem:[#allocation2 + $0x38] sm:$0xff] %v725
        %771 = vst [vmem:[#allocation2 + $0x40] sm:$0xff] %v616
        %772 = vst [vmem:[#allocation2 + $0x48] sm:$0xff] %v618
        %773 = vst [vmem:[#allocation2 + $0x50] sm:$0xff] %v729
        %774 = vst [vmem:[#allocation2 + $0x58] sm:$0xff] %v731
        %775 = vst [vmem:[#allocation2 + $0x60] sm:$0xff] %v622
        %776 = vst [vmem:[#allocation2 + $0x68] sm:$0xff] %v624
        %777 = vst [vmem:[#allocation2 + $0x70] sm:$0xff] %v735
        %778 = vst [vmem:[#allocation2 + $0x78] sm:$0xff] %v737
        %779 = vst [vmem:[#allocation2 + $0x80] sm:$0xff] %v628
        %780 = vst [vmem:[#allocation2 + $0x88] sm:$0xff] %v630
        %781 = vst [vmem:[#allocation2 + $0x90] sm:$0xff] %v741
        %782 = vst [vmem:[#allocation2 + $0x98] sm:$0xff] %v743
        %783 = vst [vmem:[#allocation2 + $0xa0] sm:$0xff] %v634
        %784 = vst [vmem:[#allocation2 + $0xa8] sm:$0xff] %v636
        %785 = vst [vmem:[#allocation2 + $0xb0] sm:$0xff] %v747
        %786 = vst [vmem:[#allocation2 + $0xb8] sm:$0xff] %v749
        %787 = vst [vmem:[#allocation2 + $0xc0] sm:$0xff] %v640
        %788 = vst [vmem:[#allocation2 + $0xc8] sm:$0xff] %v642
        %789 = vst [vmem:[#allocation2 + $0xd0] sm:$0xff] %v753
        %790 = vst [vmem:[#allocation2 + $0xd8] sm:$0xff] %v755
        %791 = vst [vmem:[#allocation2 + $0xe0] sm:$0xff] %v646
        %792 = vst [vmem:[#allocation2 + $0xe8] sm:$0xff] %v648
        %793 = vst [vmem:[#allocation2 + $0xf0] sm:$0xff] %v759
        %794 = vst [vmem:[#allocation2 + $0xf8] sm:$0xff] %v761
        %v795 = vld [vmem:[%s0] sm:$0xff]
        %p796 = scmp.eq.s32.totalorder %s35, 0
        %s797 = ssub.s32 0, %s36
        %s798 = scalar_select %p796, %s36, %s797
        %s799 = smul.u32 %s798, 8
        %v800 = vld [vmem:[#allocation3] sm:$0xff]
        %v801 = vld [vmem:[#allocation4] sm:$0xff]
        loop: start=0, step=1, limit=8
        $region57: #{tpu_custom_call.1} parent=39 // loop_pre_header
          _
        $region58: #{tpu_custom_call.1} parent=39 // loop_header
          %s803 = sphi 0, %s807
          %p804 = scmp.ge.s32.totalorder %s803, 8
          %v808 = vphi %v800, %v1061
          %v809 = vphi %v801, %v1062
        $region59: #{tpu_custom_call.1} parent=39 // loop_header_branch
          %806 = sbr.rel (%p804) target = $region63
        $region60: #{tpu_custom_call.1} parent=39 // loop_body
          %s810 = ssub.s32 7, %s803
          %s811 = scalar_select %p796, %s803, %s810
          %s812 = smul.u32 %s811, 4
          %s813 = smul.addr %s812, 8
          %s814 = scalar_lea.vmem [#allocation2], %s813
          %v815 = vld [vmem:[%s814] sm:$0xff]
          %v816 = vld [vmem:[%s814 + $0x8] sm:$0xff]
          %v817 = vld [vmem:[%s814 + $0x10] sm:$0xff]
          %v818 = vld [vmem:[%s814 + $0x18] sm:$0xff]
          %v819 = vld [vmem:[%s389] sm:$0xff]
          %v820 = vld [vmem:[%s389 + $0x8] sm:$0xff]
          %v821 = vld [vmem:[%s389 + $0x10] sm:$0xff]
          %v822 = vld [vmem:[%s389 + $0x18] sm:$0xff]
          %v823 = vld [vmem:[%s389 + $0x20] sm:$0xff]
          %v824 = vld [vmem:[%s389 + $0x28] sm:$0xff]
          %v825 = vld [vmem:[%s389 + $0x30] sm:$0xff]
          %v826 = vld [vmem:[%s389 + $0x38] sm:$0xff]
          %v827 = vld [vmem:[%s389 + $0x40] sm:$0xff]
          %v828 = vld [vmem:[%s389 + $0x48] sm:$0xff]
          %v829 = vld [vmem:[%s389 + $0x50] sm:$0xff]
          %v830 = vld [vmem:[%s389 + $0x58] sm:$0xff]
          %v831 = vld [vmem:[%s389 + $0x60] sm:$0xff]
          %v832 = vld [vmem:[%s389 + $0x68] sm:$0xff]
          %v833 = vld [vmem:[%s389 + $0x70] sm:$0xff]
          %v834 = vld [vmem:[%s389 + $0x78] sm:$0xff]
          %v835 = vld [vmem:[%s389 + $0x80] sm:$0xff]
          %v836 = vld [vmem:[%s389 + $0x88] sm:$0xff]
          %v837 = vld [vmem:[%s389 + $0x90] sm:$0xff]
          %v838 = vld [vmem:[%s389 + $0x98] sm:$0xff]
          %v839 = vld [vmem:[%s389 + $0xa0] sm:$0xff]
          %v840 = vld [vmem:[%s389 + $0xa8] sm:$0xff]
          %v841 = vld [vmem:[%s389 + $0xb0] sm:$0xff]
          %v842 = vld [vmem:[%s389 + $0xb8] sm:$0xff]
          %v843 = vld [vmem:[%s389 + $0xc0] sm:$0xff]
          %v844 = vld [vmem:[%s389 + $0xc8] sm:$0xff]
          %v845 = vld [vmem:[%s389 + $0xd0] sm:$0xff]
          %v846 = vld [vmem:[%s389 + $0xd8] sm:$0xff]
          %v847 = vld [vmem:[%s389 + $0xe0] sm:$0xff]
          %v848 = vld [vmem:[%s389 + $0xe8] sm:$0xff]
          %v849 = vld [vmem:[%s389 + $0xf0] sm:$0xff]
          %v850 = vld [vmem:[%s389 + $0xf8] sm:$0xff]
          %v851 = vld [vmem:[%s389 + $0x100] sm:$0xff]
          %v852 = vld [vmem:[%s389 + $0x108] sm:$0xff]
          %v853 = vld [vmem:[%s389 + $0x110] sm:$0xff]
          %v854 = vld [vmem:[%s389 + $0x118] sm:$0xff]
          %v855 = vld [vmem:[%s389 + $0x120] sm:$0xff]
          %v856 = vld [vmem:[%s389 + $0x128] sm:$0xff]
          %v857 = vld [vmem:[%s389 + $0x130] sm:$0xff]
          %v858 = vld [vmem:[%s389 + $0x138] sm:$0xff]
          %v859 = vld [vmem:[%s389 + $0x140] sm:$0xff]
          %v860 = vld [vmem:[%s389 + $0x148] sm:$0xff]
          %v861 = vld [vmem:[%s389 + $0x150] sm:$0xff]
          %v862 = vld [vmem:[%s389 + $0x158] sm:$0xff]
          %v863 = vld [vmem:[%s389 + $0x160] sm:$0xff]
          %v864 = vld [vmem:[%s389 + $0x168] sm:$0xff]
          %v865 = vld [vmem:[%s389 + $0x170] sm:$0xff]
          %v866 = vld [vmem:[%s389 + $0x178] sm:$0xff]
          %v867 = vld [vmem:[%s389 + $0x180] sm:$0xff]
          %v868 = vld [vmem:[%s389 + $0x188] sm:$0xff]
          %v869 = vld [vmem:[%s389 + $0x190] sm:$0xff]
          %v870 = vld [vmem:[%s389 + $0x198] sm:$0xff]
          %v871 = vld [vmem:[%s389 + $0x1a0] sm:$0xff]
          %v872 = vld [vmem:[%s389 + $0x1a8] sm:$0xff]
          %v873 = vld [vmem:[%s389 + $0x1b0] sm:$0xff]
          %v874 = vld [vmem:[%s389 + $0x1b8] sm:$0xff]
          %v875 = vld [vmem:[%s389 + $0x1c0] sm:$0xff]
          %v876 = vld [vmem:[%s389 + $0x1c8] sm:$0xff]
          %v877 = vld [vmem:[%s389 + $0x1d0] sm:$0xff]
          %v878 = vld [vmem:[%s389 + $0x1d8] sm:$0xff]
          %v879 = vld [vmem:[%s389 + $0x1e0] sm:$0xff]
          %v880 = vld [vmem:[%s389 + $0x1e8] sm:$0xff]
          %v881 = vld [vmem:[%s389 + $0x1f0] sm:$0xff]
          %v882 = vld [vmem:[%s389 + $0x1f8] sm:$0xff]
          %883 = vmatprep.subr.mxu0 %v820
          %884 = vmatpush1.msra.mxu0 %v819
          %885 = vmatprep.subr.mxu0 %v824
          %886 = vmatpush1.msra.mxu0 %v823
          %887 = vmatprep.subr.mxu0 %v828
          %888 = vmatpush1.msra.mxu0 %v827
          %889 = vmatprep.subr.mxu0 %v832
          %890 = vmatpush1.msra.mxu0 %v831
          %891 = vmatprep.subr.mxu0 %v836
          %892 = vmatpush1.msra.mxu0 %v835
          %893 = vmatprep.subr.mxu0 %v840
          %894 = vmatpush1.msra.mxu0 %v839
          %895 = vmatprep.subr.mxu0 %v844
          %896 = vmatpush1.msra.mxu0 %v843
          %897 = vmatprep.subr.mxu0 %v848
          %898 = vmatpush1.msra.mxu0 %v847
          %899 = vmatprep.subr.mxu0 %v852
          %900 = vmatpush1.msra.mxu0 %v851
          %901 = vmatprep.subr.mxu0 %v856
          %902 = vmatpush1.msra.mxu0 %v855
          %903 = vmatprep.subr.mxu0 %v860
          %904 = vmatpush1.msra.mxu0 %v859
          %905 = vmatprep.subr.mxu0 %v864
          %906 = vmatpush1.msra.mxu0 %v863
          %907 = vmatprep.subr.mxu0 %v868
          %908 = vmatpush1.msra.mxu0 %v867
          %909 = vmatprep.subr.mxu0 %v872
          %910 = vmatpush1.msra.mxu0 %v871
          %911 = vmatprep.subr.mxu0 %v876
          %912 = vmatpush1.msra.mxu0 %v875
          %913 = vmatprep.subr.mxu0 %v880
          %914 = vmatpush1.msra.mxu0 %v879
          %915 = vmatprep.subr.mxu0 0.0
          %916 = vmatpush1.msra.mxu0 0.0
          %917 = vmatprep.subr.mxu0 0.0
          %918 = vmatpush1.msra.mxu0 0.0
          %919 = vmatprep.subr.mxu0 0.0
          %920 = vmatpush1.msra.mxu0 0.0
          %921 = vmatprep.subr.mxu0 0.0
          %922 = vmatpush1.msra.mxu0 0.0
          %923 = vmatprep.subr.mxu0 0.0
          %924 = vmatpush1.msra.mxu0 0.0
          %925 = vmatprep.subr.mxu0 0.0
          %926 = vmatpush1.msra.mxu0 0.0
          %927 = vmatprep.subr.mxu0 0.0
          %928 = vmatpush1.msra.mxu0 0.0
          %929 = vmatprep.subr.mxu0 0.0
          %930 = vmatpush1.msra.mxu0 0.0
          %931 = vmatprep.subr.mxu0 0.0
          %932 = vmatpush1.msra.mxu0 0.0
          %933 = vmatprep.subr.mxu0 0.0
          %934 = vmatpush1.msra.mxu0 0.0
          %935 = vmatprep.subr.mxu0 0.0
          %936 = vmatpush1.msra.mxu0 0.0
          %937 = vmatprep.subr.mxu0 0.0
          %938 = vmatpush1.msra.mxu0 0.0
          %939 = vmatprep.subr.mxu0 0.0
          %940 = vmatpush1.msra.mxu0 0.0
          %941 = vmatprep.subr.mxu0 0.0
          %942 = vmatpush1.msra.mxu0 0.0
          %943 = vmatprep.subr.mxu0 0.0
          %944 = vmatpush1.msra.mxu0 0.0
          %945 = vmatprep.subr.mxu0 0.0
          %946 = vmatpush1.msra.mxu0 0.0
          %947 = vmatprep.mubr.f32.mxu0 0.0
          %948 = vmatmul.mubr.f32.gmra.mrb[0].mxu0 %v808
          %v949 = vpop.f32.mrb[0].mxu0
          %v950 = vadd.f32 0.0, %v949
          %v951 = vpop.f32.mrb[0].mxu0
          %v952 = vadd.f32 0.0, %v951
          %953 = vdwg.mxu0
          %954 = vmatprep.subr.mxu0 %v822
          %955 = vmatpush1.msra.mxu0 %v821
          %956 = vmatprep.subr.mxu0 %v826
          %957 = vmatpush1.msra.mxu0 %v825
          %958 = vmatprep.subr.mxu0 %v830
          %959 = vmatpush1.msra.mxu0 %v829
          %960 = vmatprep.subr.mxu0 %v834
          %961 = vmatpush1.msra.mxu0 %v833
          %962 = vmatprep.subr.mxu0 %v838
          %963 = vmatpush1.msra.mxu0 %v837
          %964 = vmatprep.subr.mxu0 %v842
          %965 = vmatpush1.msra.mxu0 %v841
          %966 = vmatprep.subr.mxu0 %v846
          %967 = vmatpush1.msra.mxu0 %v845
          %968 = vmatprep.subr.mxu0 %v850
          %969 = vmatpush1.msra.mxu0 %v849
          %970 = vmatprep.subr.mxu0 %v854
          %971 = vmatpush1.msra.mxu0 %v853
          %972 = vmatprep.subr.mxu0 %v858
          %973 = vmatpush1.msra.mxu0 %v857
          %974 = vmatprep.subr.mxu0 %v862
          %975 = vmatpush1.msra.mxu0 %v861
          %976 = vmatprep.subr.mxu0 %v866
          %977 = vmatpush1.msra.mxu0 %v865
          %978 = vmatprep.subr.mxu0 %v870
          %979 = vmatpush1.msra.mxu0 %v869
          %980 = vmatprep.subr.mxu0 %v874
          %981 = vmatpush1.msra.mxu0 %v873
          %982 = vmatprep.subr.mxu0 %v878
          %983 = vmatpush1.msra.mxu0 %v877
          %984 = vmatprep.subr.mxu0 %v882
          %985 = vmatpush1.msra.mxu0 %v881
          %986 = vmatprep.subr.mxu0 0.0
          %987 = vmatpush1.msra.mxu0 0.0
          %988 = vmatprep.subr.mxu0 0.0
          %989 = vmatpush1.msra.mxu0 0.0
          %990 = vmatprep.subr.mxu0 0.0
          %991 = vmatpush1.msra.mxu0 0.0
          %992 = vmatprep.subr.mxu0 0.0
          %993 = vmatpush1.msra.mxu0 0.0
          %994 = vmatprep.subr.mxu0 0.0
          %995 = vmatpush1.msra.mxu0 0.0
          %996 = vmatprep.subr.mxu0 0.0
          %997 = vmatpush1.msra.mxu0 0.0
          %998 = vmatprep.subr.mxu0 0.0
          %999 = vmatpush1.msra.mxu0 0.0
          %1000 = vmatprep.subr.mxu0 0.0
          %1001 = vmatpush1.msra.mxu0 0.0
          %1002 = vmatprep.subr.mxu0 0.0
          %1003 = vmatpush1.msra.mxu0 0.0
          %1004 = vmatprep.subr.mxu0 0.0
          %1005 = vmatpush1.msra.mxu0 0.0
          %1006 = vmatprep.subr.mxu0 0.0
          %1007 = vmatpush1.msra.mxu0 0.0
          %1008 = vmatprep.subr.mxu0 0.0
          %1009 = vmatpush1.msra.mxu0 0.0
          %1010 = vmatprep.subr.mxu0 0.0
          %1011 = vmatpush1.msra.mxu0 0.0
          %1012 = vmatprep.subr.mxu0 0.0
          %1013 = vmatpush1.msra.mxu0 0.0
          %1014 = vmatprep.subr.mxu0 0.0
          %1015 = vmatpush1.msra.mxu0 0.0
          %1016 = vmatprep.subr.mxu0 0.0
          %1017 = vmatpush1.msra.mxu0 0.0
          %1018 = vmatprep.mubr.f32.mxu0 0.0
          %1019 = vmatmul.mubr.f32.gmra.mrb[0].mxu0 %v808
          %v1020 = vpop.f32.mrb[0].mxu0
          %v1021 = vadd.f32 0.0, %v1020
          %v1022 = vpop.f32.mrb[0].mxu0
          %v1023 = vadd.f32 0.0, %v1022
          %1024 = vdwg.mxu0
          %v1025 = vadd.f32 %v815, %v950
          %v1026 = vadd.f32 %v816, %v952
          %v1027 = vadd.f32 %v817, %v1021
          %v1028 = vadd.f32 %v818, %v1023
          %v1029 = vxor.u32 %v1025, 2147483648
          %v1030 = vmul.f32 %v1029, 1.442695
          %v1031 = vpow.pop %v1030
          %v1032 = vadd.f32 %v1031, 1.0
          %v1033 = vrcp.pop %v1032
          %v1034 = vmul.f32 1.0, %v1033
          %v1035 = vxor.u32 %v1026, 2147483648
          %v1036 = vmul.f32 %v1035, 1.442695
          %v1037 = vpow.pop %v1036
          %v1038 = vadd.f32 %v1037, 1.0
          %v1039 = vrcp.pop %v1038
          %v1040 = vmul.f32 1.0, %v1039
          %v1041 = vtanh.pop %v1027
          %v1042 = vxor.u32 %v1028, 2147483648
          %v1043 = vmul.f32 %v1042, 1.442695
          %v1044 = vpow.pop %v1043
          %v1045 = vadd.f32 %v1044, 1.0
          %v1046 = vrcp.pop %v1045
          %v1047 = vmul.f32 1.0, %v1046
          %v1048 = vmul.f32 %v1040, %v809
          %v1049 = vmul.f32 %v1034, %v1041
          %v1050 = vadd.f32 %v1048, %v1049
          %v1051 = vtanh.pop %v1050
          %v1052 = vmul.f32 %v1047, %v1051
          %s1053 = sadd.s32 %s799, %s811
          %v1054 = vstv %s1053
          %vm1055 = vcmp.lt.s32.totalorder %v1054, %v795
          %v1056 = vsel %vm1055, 1, 0
          %1057 = vset.pattern.permute.xlu0 0
          %1058 = vperm.xlu0 %1057, %v1056
          %v1059 = vpop.permute.xlu0 %1058
          %vm1060 = vcmp.eq.s32.totalorder %v1059, 1
          %v1061 = vsel %vm1060, %v1052, %v808
          %v1062 = vsel %vm1060, %v1050, %v809
          %v1063 = vsel %vm1060, %v1052, 0.0
          %s1064 = smul.u32 %s811, 8
          %s1065 = scalar_lea.vmem %s429, %s1064 [#allocation11]
          %1066 = vst [vmem:[%s1065] sm:$0xff] %v1063
        $region61: #{tpu_custom_call.1} parent=39 // loop_footer
          %s807 = sadd.s32 1, %s803
        $region62: #{tpu_custom_call.1} parent=39 // loop_footer_branch
          %802 = sbr.rel target = $region58
        $region63: #{tpu_custom_call.1} parent=39 // loop_exit
          _
        %1067 = vst [vmem:[#allocation3] sm:$0xff] %v808
        %1068 = vst [vmem:[#allocation4] sm:$0xff] %v809
        // Predicated region
        $region64: #{tpu_custom_call.1} parent=39 // pred_check
          %p1069 = pneg %p460
        $region65: #{tpu_custom_call.1} parent=39 // pred_check_branch
          %1071 = sbr.rel (%p1069) target = $region67
        $region66: #{tpu_custom_call.1} parent=39 // pred_region
          %1072 = vst [vmem:[%s436] sm:$0xff] %v808
          %1073 = vst [vmem:[%s443] sm:$0xff] %v809
        $region67: #{tpu_custom_call.1} parent=39 // pred_fallthru
          _
        %s1074 = sand.u32 %s198, 1
        %s1075 = scalar_lea.sflag [#allocation7], %s1074
        %s1076 = sand.u32 %s198, 1
        %s1077 = smul.addr %s1076, 64
        %s1078 = scalar_lea.vmem [#allocation11], %s1077
        %s1079 = sand.u32 %s31, 1
        %s1080 = scalar_lea.sflag [#allocation13], %s1079
        %s1081 = sand.u32 %s224, 1
        %s1082 = smul.addr %s1081, 8
        %s1083 = scalar_lea.vmem [#allocation12], %s1082
        %s1084 = sand.u32 %s31, 1
        %s1085 = scalar_lea.sflag [#allocation13], %s1084
        %s1086 = sand.u32 %s250, 1
        %s1087 = smul.addr %s1086, 8
        %s1088 = scalar_lea.vmem [#allocation14], %s1087
        // Predicated region
        $region68: #{tpu_custom_call.1} parent=39 // pred_check
          %p1089 = pneg %p208
        $region69: #{tpu_custom_call.1} parent=39 // pred_check_branch
          %1091 = sbr.rel (%p1089) target = $region71
        $region70: #{tpu_custom_call.1} parent=39 // pred_region
          %s1092 = ssub.s32 0, %s36
          %s1093 = smul.u32 %s35, %s1092
          %s1094 = ssub.s32 1, %s35
          %s1095 = smul.u32 %s1094, %s36
          %s1096 = sadd.s32 %s1093, %s1095
          %s1097 = smul.u32 8, %s1096
          %s1099 = ssub.s32 1024, 1024
          %1100 = vsyncadd %s1075, %s1099
          %s1101 = smul.addr %s35, 8
          %s1102 = sadd.s32 %s1097, %s1101
          %s1103 = smul.addr %s1102, 128
          %s1104 = scalar_lea.hbm %s5, %s1103
          %s1105 = sshll.u32 %s1078, 4
          %s1106 = int_to_ptr.vmem [resolvable:$true] %s1105
          %1111 = dma.vmem_to_hbm [thread:$0]  %s1106, 1024, %s1104, %s1075, 128, 128, 8
        $region71: #{tpu_custom_call.1} parent=39 // pred_fallthru
          _
        // Predicated region
        $region72: #{tpu_custom_call.1} parent=39 // pred_check
          %p1112 = pneg %p234
        $region73: #{tpu_custom_call.1} parent=39 // pred_check_branch
          %1114 = sbr.rel (%p1112) target = $region75
        $region74: #{tpu_custom_call.1} parent=39 // pred_region
          %s1116 = ssub.s32 128, 128
          %1117 = vsyncadd %s1080, %s1116
          %s1118 = smul.addr %s35, 128
          %s1119 = scalar_lea.hbm %s6, %s1118
          %s1121 = sshll.u32 %s1083, 4
          %s1122 = int_to_ptr.vmem [resolvable:$true] %s1121
          %1124 = dma.vmem_to_hbm [thread:$0]  %s1122, 128, %s1119, %s1080
        $region75: #{tpu_custom_call.1} parent=39 // pred_fallthru
          _
        // Predicated region
        $region76: #{tpu_custom_call.1} parent=39 // pred_check
          %p1125 = pneg %p260
        $region77: #{tpu_custom_call.1} parent=39 // pred_check_branch
          %1127 = sbr.rel (%p1125) target = $region79
        $region78: #{tpu_custom_call.1} parent=39 // pred_region
          %s1129 = ssub.s32 128, 128
          %1130 = vsyncadd %s1085, %s1129
          %s1131 = smul.addr %s35, 128
          %s1132 = scalar_lea.hbm %s7, %s1131
          %s1134 = sshll.u32 %s1088, 4
          %s1135 = int_to_ptr.vmem [resolvable:$true] %s1134
          %1137 = dma.vmem_to_hbm [thread:$0]  %s1135, 128, %s1132, %s1085
        $region79: #{tpu_custom_call.1} parent=39 // pred_fallthru
          _
      $region40: #{tpu_custom_call.1} parent=5 // pred_fallthru
        _
      %p1138 = scmp.le.s32.totalorder 2, %s26
      // Predicated region
      $region80: #{tpu_custom_call.1} parent=5 // pred_check
        %p1139 = pneg %p1138
      $region81: #{tpu_custom_call.1} parent=5 // pred_check_branch
        %1141 = sbr.rel (%p1139) target = $region83
      $region82: #{tpu_custom_call.1} parent=5 // pred_region
        %s1142 = ssub.s32 %s26, 2
        // Predicated region
        $region84: #{tpu_custom_call.1} parent=82 // pred_check
          %p1143 = pneg %p214
        $region85: #{tpu_custom_call.1} parent=82 // pred_check_branch
          %1145 = sbr.rel (%p1143) target = $region87
        $region86: #{tpu_custom_call.1} parent=82 // pred_region
          %s1146 = sand.u32 %s199, 1
          %s1147 = scalar_lea.sflag [#allocation7], %s1146
          %s1148 = sand.u32 %s199, 1
          %s1149 = smul.addr %s1148, 64
          %s1150 = scalar_lea.vmem [#allocation11], %s1149
          %1151 = dma.done %s1147, 1024
        $region87: #{tpu_custom_call.1} parent=82 // pred_fallthru
          _
        // Predicated region
        $region88: #{tpu_custom_call.1} parent=82 // pred_check
          %p1152 = pneg %p240
        $region89: #{tpu_custom_call.1} parent=82 // pred_check_branch
          %1154 = sbr.rel (%p1152) target = $region91
        $region90: #{tpu_custom_call.1} parent=82 // pred_region
          %s1155 = sand.u32 %s32, 1
          %s1156 = scalar_lea.sflag [#allocation13], %s1155
          %s1157 = sand.u32 %s225, 1
          %s1158 = smul.addr %s1157, 8
          %s1159 = scalar_lea.vmem [#allocation12], %s1158
          %1160 = dma.done %s1156, 128
        $region91: #{tpu_custom_call.1} parent=82 // pred_fallthru
          _
        // Predicated region
        $region92: #{tpu_custom_call.1} parent=82 // pred_check
          %p1161 = pneg %p266
        $region93: #{tpu_custom_call.1} parent=82 // pred_check_branch
          %1163 = sbr.rel (%p1161) target = $region95
        $region94: #{tpu_custom_call.1} parent=82 // pred_region
          %s1164 = sand.u32 %s32, 1
          %s1165 = scalar_lea.sflag [#allocation13], %s1164
          %s1166 = sand.u32 %s251, 1
          %s1167 = smul.addr %s1166, 8
          %s1168 = scalar_lea.vmem [#allocation14], %s1167
          %1169 = dma.done %s1165, 128
        $region95: #{tpu_custom_call.1} parent=82 // pred_fallthru
          _
      $region83: #{tpu_custom_call.1} parent=5 // pred_fallthru
        _
    $region6: #{tpu_custom_call.1} parent=1 // loop_footer
      %s30 = sadd.s32 1, %s26
    $region7: #{tpu_custom_call.1} parent=1 // loop_footer_branch
      %25 = sbr.rel target = $region3
    $region8: #{tpu_custom_call.1} parent=1 // loop_exit
      _
    %1170 = vsyncpa [#allocation6], 1
    %s1171 = scalar_lea.sflag [#allocation6], 1
    %1172 = vsyncpa %s1171, 1
    %1173 = vsyncpa [#allocation9], 1
    %s1174 = scalar_lea.sflag [#allocation9], 1
    %1175 = vsyncpa %s1174, 1
    %1176 = vsyncpa [#allocation7], 1
    %s1177 = scalar_lea.sflag [#allocation7], 1
    %1178 = vsyncpa %s1177, 1
    %1179 = vsyncpa [#allocation13], 1
    %s1180 = scalar_lea.sflag [#allocation13], 1
    %1181 = vsyncpa %s1180, 1

</llo_original>
